<compile_context>
chip_gen: v7x
topology: tpu7x:2x2x1
jax: 0.10.0
libtpu: 0.0.40
codegen_flags: <defaults>
</compile_context>

<pallas_src>
import functools
import numpy as np
import jax
import jax.numpy as jnp
from jax import lax
from jax.experimental import pallas as pl
from jax.experimental.pallas import tpu as pltpu


def end_transformer_block_kernel(
    x_ref, xh_ref,
    wqkv_ref, wu_ref,
    w1_ref, b1_ref, w2_ref,
    vec_ref,
    o_ref,
    *, heads, k, t, b_tile, use_bf16):
  """One grid step processes a (b_tile*t, k) row-slab of the flattened [b*t, k] input."""
  mm_dtype = jnp.bfloat16 if use_bf16 else jnp.float32
  hk = heads * k

  def mm(a, w):                           # a @ w on the MXU, f32 accumulate
    return jnp.dot(a.astype(mm_dtype), w, preferred_element_type=jnp.float32)

  def mm_nt(a, b):                        # a @ b.T without materializing the transpose
    return lax.dot_general(a.astype(mm_dtype), b.astype(mm_dtype),
                           (((1,), (1,)), ((), ())),
                           preferred_element_type=jnp.float32)

  x = x_ref[...]                          # [b_tile*t, k]  (f32)
  xh = xh_ref[...]

  vecs = vec_ref[...]                     # [8, k] packed per-channel vectors (f32)
  s1 = vecs[0:1, :]                       # BN1 scale
  t1 = vecs[1:2, :]                       # BN1 shift (+ folded unifyheads bias)
  s2 = vecs[2:3, :]                       # BN2 scale
  t2 = vecs[3:4, :]                       # BN2 shift (+ folded conv2 bias)

  # ---------------- SelfAttention ----------------
  # Fused Q/K/V projection; the k^-0.25 query/key scaling is folded into the weight.
  qkv = mm(x, wqkv_ref[...])              # [b_tile*t, 3*hk]
  wu = wu_ref[...]                        # [hk, k]

  # Per batch element / head; heads & b_tile are tiny static ints -> unrolled.
  # TODO(synk): for large t switch to lax.fori_loop / flash-style q tiling to bound
  # live ranges and fit the 64 MiB v7x VMEM budget.
  att_rows = []
  for bi in range(b_tile):
    r0 = bi * t
    acc = None
    for hi in range(heads):
      c0 = hi * k
      q = qkv[r0:r0 + t, c0:c0 + k]                       # [t, k]
      ks = qkv[r0:r0 + t, hk + c0:hk + c0 + k]            # [t, k]
      vs = qkv[r0:r0 + t, 2 * hk + c0:2 * hk + c0 + k]    # [t, k]
      dot = mm_nt(q, ks)                                  # [t, t]
      m = jnp.max(dot, axis=-1, keepdims=True)
      p = jnp.exp(dot - m)
      r = pl.reciprocal(jnp.sum(p, axis=-1, keepdims=True), approx=use_bf16)
      out_h = mm(p, vs) * r                               # normalize after PV matmul
      # unifyheads contribution: sublane-aligned Wu row slice, accumulated (no concat)
      contrib = mm(out_h, wu[c0:c0 + k, :])               # [t, k]
      acc = contrib if acc is None else acc + contrib
    att_rows.append(acc)
  att = att_rows[0] if b_tile == 1 else jnp.concatenate(att_rows, axis=0)

  # residuals + eval BatchNorm1d #1 (unify bias + BN folded to one scale/shift)
  y = (att + x + xh) * s1 + t1                            # [b_tile*t, k]

  # -------- MLP: Conv1d(k,4k,1) -> ReLU -> Conv1d(4k,k,1), residual, BN2 --------
  hdn = jnp.maximum(mm(y, w1_ref[...]) + b1_ref[...], 0.0)   # [b_tile*t, 4k]
  ff = mm(hdn, w2_ref[...]) + y                              # conv2 bias folded into t2
  z = ff * s2 + t2

  # TODO(synk): training-mode attention/forward dropout omitted (identity at inference).
  o_ref[...] = z.astype(o_ref.dtype)


def end_transformer_block_forward(x, x_high, params, eps=1e-5,
                                  use_bf16_matmul=True, batch_tile=None):
  """Runs the EndTransformerBlock forward (eval mode). Returns [b, t, k]."""
  b, t, k = x.shape
  heads = int(params["heads"])
  hk = heads * k
  mm_dtype = jnp.bfloat16 if use_bf16_matmul else jnp.float32

  # ---- weight prep: fused QKV (with folded k^-0.25 scale), pre-cast to MXU dtype ----
  scale = float(k) ** -0.25
  wq_t = jnp.asarray(params["wq"]).T * scale              # [k, hk]
  wk_t = jnp.asarray(params["wk"]).T * scale              # [k, hk]
  wv_t = jnp.asarray(params["wv"]).T                      # [k, hk]
  wqkv = jnp.concatenate([wq_t, wk_t, wv_t], axis=1).astype(mm_dtype)   # [k, 3*hk]
  wu_t = jnp.asarray(params["wu"]).T.astype(mm_dtype)     # [hk, k]
  w1_t = jnp.asarray(params["w1"]).T.astype(mm_dtype)     # [k, 4k]
  w2_t = jnp.asarray(params["w2"]).T.astype(mm_dtype)     # [4k, k]
  b1 = jnp.asarray(params["b1"]).reshape(1, 4 * k).astype(jnp.float32)

  # ---- fold eval BatchNorm1d + preceding biases into per-channel scale/shift ----
  s1 = params["bn1_gamma"] / jnp.sqrt(params["bn1_var"] + eps)
  t1 = params["bn1_beta"] - params["bn1_mean"] * s1 + params["bu"] * s1
  s2 = params["bn2_gamma"] / jnp.sqrt(params["bn2_var"] + eps)
  t2 = params["bn2_beta"] - params["bn2_mean"] * s2 + params["b2"] * s2
  vecs = jnp.zeros((8, k), jnp.float32)
  vecs = vecs.at[0].set(s1).at[1].set(t1).at[2].set(s2).at[3].set(t2)

  # ---- batch tiling: flatten batch into the matmul M dim; keep >=2 grid steps ----
  if batch_tile is None:
    cap = max(1, b // 2)            # >=2 steps when b>=2 so both v7x TCs get work
    batch_tile = max(d for d in range(1, cap + 1) if b % d == 0)
  assert b % batch_tile == 0
  steps = b // batch_tile
  rows = batch_tile * t

  x2 = x.reshape(b * t, k).astype(jnp.float32)            # free layout view
  xh2 = x_high.reshape(b * t, k).astype(jnp.float32)

  def const_spec(shape):
    return pl.BlockSpec(shape, lambda i: (0,) * len(shape))   # resident across steps

  slab = pl.BlockSpec((rows, k), lambda i: (i, 0))

  flops = (2 * b * t * k * 3 * hk                          # fused QKV projection
           + b * heads * (4 * t * t * k + 2 * t * k * k)   # scores + PV + unify
           + 16 * b * t * k * k)                           # MLP (two 1x1 convs)
  transcendentals = b * heads * t * (t + 1)                # exp + reciprocal
  wbytes = 2 if use_bf16_matmul else 4
  bytes_accessed = (4 * 3 * b * t * k
                    + wbytes * (k * 3 * hk + hk * k + 8 * k * k)
                    + 4 * (4 * k + 8 * k))
  cost = pl.CostEstimate(flops=flops, transcendentals=transcendentals,
                         bytes_accessed=bytes_accessed)

  kernel = functools.partial(end_transformer_block_kernel,
                             heads=heads, k=k, t=t, b_tile=batch_tile,
                             use_bf16=use_bf16_matmul)

  out2 = pl.pallas_call(
      kernel,
      grid=(steps,),
      in_specs=[
          slab,                        # x        [b*t, k]
          slab,                        # x_high   [b*t, k]
          const_spec((k, 3 * hk)),     # fused Wqkv^T
          const_spec((hk, k)),         # Wu^T
          const_spec((k, 4 * k)),      # W1^T
          const_spec((1, 4 * k)),      # b1
          const_spec((4 * k, k)),      # W2^T
          const_spec((8, k)),          # packed per-channel scale/shift vectors
      ],
      out_specs=slab,
      out_shape=jax.ShapeDtypeStruct((b * t, k), jnp.float32),
      compiler_params=pltpu.CompilerParams(
          dimension_semantics=("parallel",)),   # split batch slabs across TCs on v7x
      cost_estimate=cost,
  )(x2, xh2, wqkv, wu_t, w1_t, b1, w2_t, vecs)

  return out2.reshape(b, t, k)


def end_transformer_block_ref(x, x_high, params, eps=1e-5):
  """Pure-JAX reference matching the PyTorch module in eval mode."""
  b, t, k = x.shape
  h = int(params["heads"])
  q = (x @ params["wq"].T).reshape(b, t, h, k)
  kk = (x @ params["wk"].T).reshape(b, t, h, k)
  v = (x @ params["wv"].T).reshape(b, t, h, k)
  q = jnp.transpose(q, (0, 2, 1, 3)).reshape(b * h, t, k) / (k ** 0.25)
  kk = jnp.transpose(kk, (0, 2, 1, 3)).reshape(b * h, t, k) / (k ** 0.25)
  v = jnp.transpose(v, (0, 2, 1, 3)).reshape(b * h, t, k)
  dot = jnp.einsum("bqd,bkd->bqk", q, kk)
  attn = jax.nn.softmax(dot, axis=-1)
  out = jnp.einsum("bqk,bkd->bqd", attn, v).reshape(b, h, t, k)
  out = jnp.transpose(out, (0, 2, 1, 3)).reshape(b, t, h * k)
  attended = out @ params["wu"].T + params["bu"]
  attended = attended + x + x_high
  y = (attended - params["bn1_mean"]) / jnp.sqrt(params["bn1_var"] + eps) \
      * params["bn1_gamma"] + params["bn1_beta"]
  hdn = jnp.maximum(y @ params["w1"].T + params["b1"], 0.0)
  ff = hdn @ params["w2"].T + params["b2"]
  ff = ff + y
  z = (ff - params["bn2_mean"]) / jnp.sqrt(params["bn2_var"] + eps) \
      * params["bn2_gamma"] + params["bn2_beta"]
  return z


if __name__ == "__main__":
  # small deterministic problem: batch=2, seq=8, hidden k=32, heads=4 (h*k = 128 lanes)
  b, t, k, heads = 2, 8, 32, 4
  hk = heads * k

  key = jax.random.PRNGKey(0)
  ks = jax.random.split(key, 19)
  bk = 1.0 / np.sqrt(k)
  bhk = 1.0 / np.sqrt(hk)
  b4k = 1.0 / np.sqrt(4 * k)

  params = {
      "heads": heads,
      # SelfAttention (PyTorch Linear layout: [out, in])
      "wq": jax.random.uniform(ks[0], (hk, k), jnp.float32, -bk, bk),
      "wk": jax.random.uniform(ks[1], (hk, k), jnp.float32, -bk, bk),
      "wv": jax.random.uniform(ks[2], (hk, k), jnp.float32, -bk, bk),
      "wu": jax.random.uniform(ks[3], (k, hk), jnp.float32, -bhk, bhk),
      "bu": jax.random.uniform(ks[4], (k,), jnp.float32, -bhk, bhk),
      # BatchNorm1d #1 (eval-mode running stats + affine)
      "bn1_gamma": jax.random.uniform(ks[5], (k,), jnp.float32, 0.5, 1.5),
      "bn1_beta": jax.random.uniform(ks[6], (k,), jnp.float32, -0.5, 0.5),
      "bn1_mean": 0.1 * jax.random.normal(ks[7], (k,), jnp.float32),
      "bn1_var": jax.random.uniform(ks[8], (k,), jnp.float32, 0.5, 1.5),
      # MLP: Conv1d(k,4k,1) and Conv1d(4k,k,1) == Linear weights [out, in]
      "w1": jax.random.uniform(ks[9], (4 * k, k), jnp.float32, -bk, bk),
      "b1": jax.random.uniform(ks[10], (4 * k,), jnp.float32, -bk, bk),
      "w2": jax.random.uniform(ks[11], (k, 4 * k), jnp.float32, -b4k, b4k),
      "b2": jax.random.uniform(ks[12], (k,), jnp.float32, -b4k, b4k),
      # BatchNorm1d #2
      "bn2_gamma": jax.random.uniform(ks[13], (k,), jnp.float32, 0.5, 1.5),
      "bn2_beta": jax.random.uniform(ks[14], (k,), jnp.float32, -0.5, 0.5),
      "bn2_mean": 0.1 * jax.random.normal(ks[15], (k,), jnp.float32),
      "bn2_var": jax.random.uniform(ks[16], (k,), jnp.float32, 0.5, 1.5),
  }
  x = jax.random.normal(ks[17], (b, t, k), jnp.float32)
  x_high = jax.random.normal(ks[18], (b, t, k), jnp.float32)

  # pure-JAX reference (forced full-precision matmuls)
  with jax.default_matmul_precision("highest"):
    ref = end_transformer_block_ref(x, x_high, params)
    ref = jax.block_until_ready(ref)

  # f32 MXU path: tight correctness check
  out_f32 = end_transformer_block_forward(x, x_high, params, use_bf16_matmul=False)
  out_f32 = jax.block_until_ready(out_f32)
  np.testing.assert_allclose(np.asarray(out_f32), np.asarray(ref),
                             rtol=1e-4, atol=1e-4)

  # bf16 MXU fast path (pre-cast weights, f32 accumulate): relaxed tolerance
  out_bf16 = end_transformer_block_forward(x, x_high, params, use_bf16_matmul=True)
  out_bf16 = jax.block_until_ready(out_bf16)
  np.testing.assert_allclose(np.asarray(out_bf16), np.asarray(ref),
                             rtol=5e-2, atol=5e-2)

  print("KERNEL_OK")
</pallas_src>

<mosaic_0001>
module attributes {stable_mosaic.version = 11 : i64} {
  func.func @end_transformer_block_kernel(%arg0: i32, %arg1: memref<8x32xf32, #tpu.memory_space<vmem>>, %arg2: memref<8x32xf32, #tpu.memory_space<vmem>>, %arg3: memref<32x384xf32, #tpu.memory_space<vmem>>, %arg4: memref<128x32xf32, #tpu.memory_space<vmem>>, %arg5: memref<32x128xf32, #tpu.memory_space<vmem>>, %arg6: memref<1x128xf32, #tpu.memory_space<vmem>>, %arg7: memref<128x32xf32, #tpu.memory_space<vmem>>, %arg8: memref<8x32xf32, #tpu.memory_space<vmem>>, %arg9: memref<8x32xf32, #tpu.memory_space<vmem>>) attributes {dimension_semantics = [#tpu.dimension_semantics<parallel>], iteration_bounds = array<i64: 2>, scalar_prefetch = 0 : i64, scratch_operands = 0 : i64, tpu.core_type = #tpu.core_type<tc>, window_params = [{transform_indices = @transform_0, window_bounds = array<i64: 8, 32>}, {transform_indices = @transform_1, window_bounds = array<i64: 8, 32>}, {pipeline_mode = #tpu.pipeline_mode<synchronous>, transform_indices = @transform_2, window_bounds = array<i64: 32, 384>}, {pipeline_mode = #tpu.pipeline_mode<synchronous>, transform_indices = @transform_3, window_bounds = array<i64: 128, 32>}, {pipeline_mode = #tpu.pipeline_mode<synchronous>, transform_indices = @transform_4, window_bounds = array<i64: 32, 128>}, {pipeline_mode = #tpu.pipeline_mode<synchronous>, transform_indices = @transform_5, window_bounds = array<i64: 1, 128>}, {pipeline_mode = #tpu.pipeline_mode<synchronous>, transform_indices = @transform_6, window_bounds = array<i64: 128, 32>}, {pipeline_mode = #tpu.pipeline_mode<synchronous>, transform_indices = @transform_7, window_bounds = array<i64: 8, 32>}, {transform_indices = @transform_8, window_bounds = array<i64: 8, 32>}]} {
    %c0 = arith.constant 0 : index
    %c0_0 = arith.constant 0 : index
    %0 = vector.load %arg1[%c0, %c0_0] : memref<8x32xf32, #tpu.memory_space<vmem>>, vector<8x32xf32>
    %c0_1 = arith.constant 0 : index
    %c0_2 = arith.constant 0 : index
    %1 = vector.load %arg2[%c0_1, %c0_2] : memref<8x32xf32, #tpu.memory_space<vmem>>, vector<8x32xf32>
    %c0_3 = arith.constant 0 : index
    %c0_4 = arith.constant 0 : index
    %2 = vector.load %arg8[%c0_3, %c0_4] : memref<8x32xf32, #tpu.memory_space<vmem>>, vector<8x32xf32>
    %3 = vector.extract_strided_slice %2 {offsets = [0, 0], sizes = [1, 32], strides = [1, 1]} : vector<8x32xf32> to vector<1x32xf32>
    %4 = vector.extract_strided_slice %2 {offsets = [1, 0], sizes = [1, 32], strides = [1, 1]} : vector<8x32xf32> to vector<1x32xf32>
    %5 = vector.extract_strided_slice %2 {offsets = [2, 0], sizes = [1, 32], strides = [1, 1]} : vector<8x32xf32> to vector<1x32xf32>
    %6 = vector.extract_strided_slice %2 {offsets = [3, 0], sizes = [1, 32], strides = [1, 1]} : vector<8x32xf32> to vector<1x32xf32>
    %c0_5 = arith.constant 0 : index
    %c0_6 = arith.constant 0 : index
    %7 = vector.load %arg3[%c0_5, %c0_6] : memref<32x384xf32, #tpu.memory_space<vmem>>, vector<32x384xf32>
    %cst = arith.constant dense<0.000000e+00> : vector<8x384xf32>
    %8 = tpu.matmul %0, %7, %cst {dimension_numbers = #tpu.dot_dimension_numbers<[1], [0], [0], [1], [0, 0, 1, 1], [], []>} : vector<8x32xf32>, vector<32x384xf32>, vector<8x384xf32> -> vector<8x384xf32>
    %c0_7 = arith.constant 0 : index
    %c0_8 = arith.constant 0 : index
    %9 = vector.load %arg4[%c0_7, %c0_8] : memref<128x32xf32, #tpu.memory_space<vmem>>, vector<128x32xf32>
    %10 = vector.extract_strided_slice %8 {offsets = [0, 0], sizes = [8, 32], strides = [1, 1]} : vector<8x384xf32> to vector<8x32xf32>
    %11 = vector.extract_strided_slice %8 {offsets = [0, 128], sizes = [8, 32], strides = [1, 1]} : vector<8x384xf32> to vector<8x32xf32>
    %12 = vector.extract_strided_slice %8 {offsets = [0, 256], sizes = [8, 32], strides = [1, 1]} : vector<8x384xf32> to vector<8x32xf32>
    %cst_9 = arith.constant dense<0.000000e+00> : vector<8x8xf32>
    %13 = tpu.matmul %10, %11, %cst_9 {dimension_numbers = #tpu.dot_dimension_numbers<[1], [1], [0], [0], [0, 0, 1, 0], [], []>} : vector<8x32xf32>, vector<8x32xf32>, vector<8x8xf32> -> vector<8x8xf32>
    %cst_10 = arith.constant dense<0xFF800000> : vector<8xf32>
    %14 = vector.multi_reduction <maximumf>, %13, %cst_10 [1] : vector<8x8xf32> to vector<8xf32>
    %15 = vector.shape_cast %14 : vector<8xf32> to vector<8x1xf32>
    %16 = vector.broadcast %15 : vector<8x1xf32> to vector<8x8xf32>
    %17 = arith.subf %13, %16 : vector<8x8xf32>
    %18 = math.exp %17 : vector<8x8xf32>
    %cst_11 = arith.constant dense<0.000000e+00> : vector<8xf32>
    %19 = vector.multi_reduction <add>, %18, %cst_11 [1] : vector<8x8xf32> to vector<8xf32>
    %20 = vector.shape_cast %19 : vector<8xf32> to vector<8x1xf32>
    %21 = tpu.reciprocal %20 : vector<8x1xf32> -> vector<8x1xf32>
    %cst_12 = arith.constant dense<0.000000e+00> : vector<8x32xf32>
    %22 = tpu.matmul %18, %12, %cst_12 {dimension_numbers = #tpu.dot_dimension_numbers<[1], [0], [0], [1], [0, 0, 1, 1], [], []>} : vector<8x8xf32>, vector<8x32xf32>, vector<8x32xf32> -> vector<8x32xf32>
    %23 = vector.broadcast %21 : vector<8x1xf32> to vector<8x32xf32>
    %24 = arith.mulf %22, %23 : vector<8x32xf32>
    %25 = vector.extract_strided_slice %9 {offsets = [0, 0], sizes = [32, 32], strides = [1, 1]} : vector<128x32xf32> to vector<32x32xf32>
    %cst_13 = arith.constant dense<0.000000e+00> : vector<8x32xf32>
    %26 = tpu.matmul %24, %25, %cst_13 {dimension_numbers = #tpu.dot_dimension_numbers<[1], [0], [0], [1], [0, 0, 1, 1], [], []>} : vector<8x32xf32>, vector<32x32xf32>, vector<8x32xf32> -> vector<8x32xf32>
    %27 = vector.extract_strided_slice %8 {offsets = [0, 32], sizes = [8, 32], strides = [1, 1]} : vector<8x384xf32> to vector<8x32xf32>
    %28 = vector.extract_strided_slice %8 {offsets = [0, 160], sizes = [8, 32], strides = [1, 1]} : vector<8x384xf32> to vector<8x32xf32>
    %29 = vector.extract_strided_slice %8 {offsets = [0, 288], sizes = [8, 32], strides = [1, 1]} : vector<8x384xf32> to vector<8x32xf32>
    %cst_14 = arith.constant dense<0.000000e+00> : vector<8x8xf32>
    %30 = tpu.matmul %27, %28, %cst_14 {dimension_numbers = #tpu.dot_dimension_numbers<[1], [1], [0], [0], [0, 0, 1, 0], [], []>} : vector<8x32xf32>, vector<8x32xf32>, vector<8x8xf32> -> vector<8x8xf32>
    %cst_15 = arith.constant dense<0xFF800000> : vector<8xf32>
    %31 = vector.multi_reduction <maximumf>, %30, %cst_15 [1] : vector<8x8xf32> to vector<8xf32>
    %32 = vector.shape_cast %31 : vector<8xf32> to vector<8x1xf32>
    %33 = vector.broadcast %32 : vector<8x1xf32> to vector<8x8xf32>
    %34 = arith.subf %30, %33 : vector<8x8xf32>
    %35 = math.exp %34 : vector<8x8xf32>
    %cst_16 = arith.constant dense<0.000000e+00> : vector<8xf32>
    %36 = vector.multi_reduction <add>, %35, %cst_16 [1] : vector<8x8xf32> to vector<8xf32>
    %37 = vector.shape_cast %36 : vector<8xf32> to vector<8x1xf32>
    %38 = tpu.reciprocal %37 : vector<8x1xf32> -> vector<8x1xf32>
    %cst_17 = arith.constant dense<0.000000e+00> : vector<8x32xf32>
    %39 = tpu.matmul %35, %29, %cst_17 {dimension_numbers = #tpu.dot_dimension_numbers<[1], [0], [0], [1], [0, 0, 1, 1], [], []>} : vector<8x8xf32>, vector<8x32xf32>, vector<8x32xf32> -> vector<8x32xf32>
    %40 = vector.broadcast %38 : vector<8x1xf32> to vector<8x32xf32>
    %41 = arith.mulf %39, %40 : vector<8x32xf32>
    %42 = vector.extract_strided_slice %9 {offsets = [32, 0], sizes = [32, 32], strides = [1, 1]} : vector<128x32xf32> to vector<32x32xf32>
    %cst_18 = arith.constant dense<0.000000e+00> : vector<8x32xf32>
    %43 = tpu.matmul %41, %42, %cst_18 {dimension_numbers = #tpu.dot_dimension_numbers<[1], [0], [0], [1], [0, 0, 1, 1], [], []>} : vector<8x32xf32>, vector<32x32xf32>, vector<8x32xf32> -> vector<8x32xf32>
    %44 = arith.addf %26, %43 : vector<8x32xf32>
    %45 = vector.extract_strided_slice %8 {offsets = [0, 64], sizes = [8, 32], strides = [1, 1]} : vector<8x384xf32> to vector<8x32xf32>
    %46 = vector.extract_strided_slice %8 {offsets = [0, 192], sizes = [8, 32], strides = [1, 1]} : vector<8x384xf32> to vector<8x32xf32>
    %47 = vector.extract_strided_slice %8 {offsets = [0, 320], sizes = [8, 32], strides = [1, 1]} : vector<8x384xf32> to vector<8x32xf32>
    %cst_19 = arith.constant dense<0.000000e+00> : vector<8x8xf32>
    %48 = tpu.matmul %45, %46, %cst_19 {dimension_numbers = #tpu.dot_dimension_numbers<[1], [1], [0], [0], [0, 0, 1, 0], [], []>} : vector<8x32xf32>, vector<8x32xf32>, vector<8x8xf32> -> vector<8x8xf32>
    %cst_20 = arith.constant dense<0xFF800000> : vector<8xf32>
    %49 = vector.multi_reduction <maximumf>, %48, %cst_20 [1] : vector<8x8xf32> to vector<8xf32>
    %50 = vector.shape_cast %49 : vector<8xf32> to vector<8x1xf32>
    %51 = vector.broadcast %50 : vector<8x1xf32> to vector<8x8xf32>
    %52 = arith.subf %48, %51 : vector<8x8xf32>
    %53 = math.exp %52 : vector<8x8xf32>
    %cst_21 = arith.constant dense<0.000000e+00> : vector<8xf32>
    %54 = vector.multi_reduction <add>, %53, %cst_21 [1] : vector<8x8xf32> to vector<8xf32>
    %55 = vector.shape_cast %54 : vector<8xf32> to vector<8x1xf32>
    %56 = tpu.reciprocal %55 : vector<8x1xf32> -> vector<8x1xf32>
    %cst_22 = arith.constant dense<0.000000e+00> : vector<8x32xf32>
    %57 = tpu.matmul %53, %47, %cst_22 {dimension_numbers = #tpu.dot_dimension_numbers<[1], [0], [0], [1], [0, 0, 1, 1], [], []>} : vector<8x8xf32>, vector<8x32xf32>, vector<8x32xf32> -> vector<8x32xf32>
    %58 = vector.broadcast %56 : vector<8x1xf32> to vector<8x32xf32>
    %59 = arith.mulf %57, %58 : vector<8x32xf32>
    %60 = vector.extract_strided_slice %9 {offsets = [64, 0], sizes = [32, 32], strides = [1, 1]} : vector<128x32xf32> to vector<32x32xf32>
    %cst_23 = arith.constant dense<0.000000e+00> : vector<8x32xf32>
    %61 = tpu.matmul %59, %60, %cst_23 {dimension_numbers = #tpu.dot_dimension_numbers<[1], [0], [0], [1], [0, 0, 1, 1], [], []>} : vector<8x32xf32>, vector<32x32xf32>, vector<8x32xf32> -> vector<8x32xf32>
    %62 = arith.addf %44, %61 : vector<8x32xf32>
    %63 = vector.extract_strided_slice %8 {offsets = [0, 96], sizes = [8, 32], strides = [1, 1]} : vector<8x384xf32> to vector<8x32xf32>
    %64 = vector.extract_strided_slice %8 {offsets = [0, 224], sizes = [8, 32], strides = [1, 1]} : vector<8x384xf32> to vector<8x32xf32>
    %65 = vector.extract_strided_slice %8 {offsets = [0, 352], sizes = [8, 32], strides = [1, 1]} : vector<8x384xf32> to vector<8x32xf32>
    %cst_24 = arith.constant dense<0.000000e+00> : vector<8x8xf32>
    %66 = tpu.matmul %63, %64, %cst_24 {dimension_numbers = #tpu.dot_dimension_numbers<[1], [1], [0], [0], [0, 0, 1, 0], [], []>} : vector<8x32xf32>, vector<8x32xf32>, vector<8x8xf32> -> vector<8x8xf32>
    %cst_25 = arith.constant dense<0xFF800000> : vector<8xf32>
    %67 = vector.multi_reduction <maximumf>, %66, %cst_25 [1] : vector<8x8xf32> to vector<8xf32>
    %68 = vector.shape_cast %67 : vector<8xf32> to vector<8x1xf32>
    %69 = vector.broadcast %68 : vector<8x1xf32> to vector<8x8xf32>
    %70 = arith.subf %66, %69 : vector<8x8xf32>
    %71 = math.exp %70 : vector<8x8xf32>
    %cst_26 = arith.constant dense<0.000000e+00> : vector<8xf32>
    %72 = vector.multi_reduction <add>, %71, %cst_26 [1] : vector<8x8xf32> to vector<8xf32>
    %73 = vector.shape_cast %72 : vector<8xf32> to vector<8x1xf32>
    %74 = tpu.reciprocal %73 : vector<8x1xf32> -> vector<8x1xf32>
    %cst_27 = arith.constant dense<0.000000e+00> : vector<8x32xf32>
    %75 = tpu.matmul %71, %65, %cst_27 {dimension_numbers = #tpu.dot_dimension_numbers<[1], [0], [0], [1], [0, 0, 1, 1], [], []>} : vector<8x8xf32>, vector<8x32xf32>, vector<8x32xf32> -> vector<8x32xf32>
    %76 = vector.broadcast %74 : vector<8x1xf32> to vector<8x32xf32>
    %77 = arith.mulf %75, %76 : vector<8x32xf32>
    %78 = vector.extract_strided_slice %9 {offsets = [96, 0], sizes = [32, 32], strides = [1, 1]} : vector<128x32xf32> to vector<32x32xf32>
    %cst_28 = arith.constant dense<0.000000e+00> : vector<8x32xf32>
    %79 = tpu.matmul %77, %78, %cst_28 {dimension_numbers = #tpu.dot_dimension_numbers<[1], [0], [0], [1], [0, 0, 1, 1], [], []>} : vector<8x32xf32>, vector<32x32xf32>, vector<8x32xf32> -> vector<8x32xf32>
    %80 = arith.addf %62, %79 : vector<8x32xf32>
    %81 = arith.addf %80, %0 : vector<8x32xf32>
    %82 = arith.addf %81, %1 : vector<8x32xf32>
    %83 = vector.broadcast %3 : vector<1x32xf32> to vector<8x32xf32>
    %84 = arith.mulf %82, %83 : vector<8x32xf32>
    %85 = vector.broadcast %4 : vector<1x32xf32> to vector<8x32xf32>
    %86 = arith.addf %84, %85 : vector<8x32xf32>
    %c0_29 = arith.constant 0 : index
    %c0_30 = arith.constant 0 : index
    %87 = vector.load %arg5[%c0_29, %c0_30] : memref<32x128xf32, #tpu.memory_space<vmem>>, vector<32x128xf32>
    %cst_31 = arith.constant dense<0.000000e+00> : vector<8x128xf32>
    %88 = tpu.matmul %86, %87, %cst_31 {dimension_numbers = #tpu.dot_dimension_numbers<[1], [0], [0], [1], [0, 0, 1, 1], [], []>} : vector<8x32xf32>, vector<32x128xf32>, vector<8x128xf32> -> vector<8x128xf32>
    %c0_32 = arith.constant 0 : index
    %c0_33 = arith.constant 0 : index
    %89 = vector.load %arg6[%c0_32, %c0_33] : memref<1x128xf32, #tpu.memory_space<vmem>>, vector<1x128xf32>
    %90 = vector.broadcast %89 : vector<1x128xf32> to vector<8x128xf32>
    %91 = arith.addf %88, %90 : vector<8x128xf32>
    %cst_34 = arith.constant 0.000000e+00 : f32
    %92 = vector.broadcast %cst_34 : f32 to vector<8x128xf32>
    %93 = arith.maximumf %91, %92 : vector<8x128xf32>
    %c0_35 = arith.constant 0 : index
    %c0_36 = arith.constant 0 : index
    %94 = vector.load %arg7[%c0_35, %c0_36] : memref<128x32xf32, #tpu.memory_space<vmem>>, vector<128x32xf32>
    %cst_37 = arith.constant dense<0.000000e+00> : vector<8x32xf32>
    %95 = tpu.matmul %93, %94, %cst_37 {dimension_numbers = #tpu.dot_dimension_numbers<[1], [0], [0], [1], [0, 0, 1, 1], [], []>} : vector<8x128xf32>, vector<128x32xf32>, vector<8x32xf32> -> vector<8x32xf32>
    %96 = arith.addf %95, %86 : vector<8x32xf32>
    %97 = vector.broadcast %5 : vector<1x32xf32> to vector<8x32xf32>
    %98 = arith.mulf %96, %97 : vector<8x32xf32>
    %99 = vector.broadcast %6 : vector<1x32xf32> to vector<8x32xf32>
    %100 = arith.addf %98, %99 : vector<8x32xf32>
    %c0_38 = arith.constant 0 : index
    %c0_39 = arith.constant 0 : index
    %101 = vector.load %arg9[%c0_38, %c0_39] : memref<8x32xf32, #tpu.memory_space<vmem>>, vector<8x32xf32>
    tpu.vector_store %arg9[%c0_38, %c0_39], %100 {strides = array<i32>} : memref<8x32xf32, #tpu.memory_space<vmem>>, vector<8x32xf32>,
    return
  }
  func.func @transform_0(%arg0: i32) -> (i32, i32) {
    %c0_i32 = arith.constant 0 : i32
    %c0_i32_0 = arith.constant 0 : i32
    return %arg0, %c0_i32 : i32, i32
  }
  func.func @transform_1(%arg0: i32) -> (i32, i32) {
    %c0_i32 = arith.constant 0 : i32
    %c0_i32_0 = arith.constant 0 : i32
    return %arg0, %c0_i32 : i32, i32
  }
  func.func @transform_2(%arg0: i32) -> (i32, i32) {
    %c0_i32 = arith.constant 0 : i32
    %c0_i32_0 = arith.constant 0 : i32
    %c0_i32_1 = arith.constant 0 : i32
    return %c0_i32, %c0_i32_0 : i32, i32
  }
  func.func @transform_3(%arg0: i32) -> (i32, i32) {
    %c0_i32 = arith.constant 0 : i32
    %c0_i32_0 = arith.constant 0 : i32
    %c0_i32_1 = arith.constant 0 : i32
    return %c0_i32, %c0_i32_0 : i32, i32
  }
  func.func @transform_4(%arg0: i32) -> (i32, i32) {
    %c0_i32 = arith.constant 0 : i32
    %c0_i32_0 = arith.constant 0 : i32
    %c0_i32_1 = arith.constant 0 : i32
    return %c0_i32, %c0_i32_0 : i32, i32
  }
  func.func @transform_5(%arg0: i32) -> (i32, i32) {
    %c0_i32 = arith.constant 0 : i32
    %c0_i32_0 = arith.constant 0 : i32
    %c0_i32_1 = arith.constant 0 : i32
    return %c0_i32, %c0_i32_0 : i32, i32
  }
  func.func @transform_6(%arg0: i32) -> (i32, i32) {
    %c0_i32 = arith.constant 0 : i32
    %c0_i32_0 = arith.constant 0 : i32
    %c0_i32_1 = arith.constant 0 : i32
    return %c0_i32, %c0_i32_0 : i32, i32
  }
  func.func @transform_7(%arg0: i32) -> (i32, i32) {
    %c0_i32 = arith.constant 0 : i32
    %c0_i32_0 = arith.constant 0 : i32
    %c0_i32_1 = arith.constant 0 : i32
    return %c0_i32, %c0_i32_0 : i32, i32
  }
  func.func @transform_8(%arg0: i32) -> (i32, i32) {
    %c0_i32 = arith.constant 0 : i32
    %c0_i32_0 = arith.constant 0 : i32
    return %arg0, %c0_i32 : i32, i32
  }
}

</mosaic_0001>

<llo_original>
// kernel: tpu_custom_call.1
$region0: #{tpu_custom_call.1}
  #allocation0 [shape = 'u32[]', space=smem, size = 0x4, offset = 0x4, fixed_abs, tag = 'smem constant byte address 0x4 - core index']
  #allocation1 [shape = 'u32[144,128]{1,0:T(1,128)}', space=vmem, size = 0x12000, scoped, tag = 'internal scratch']
  %s0 = inlined_call_operand.vmem [shape: f32[16,32], index: 0, kind: input, shape index: {}]
  %s1 = inlined_call_operand.vmem [shape: f32[16,32], index: 1, kind: input, shape index: {}]
  %s2 = inlined_call_operand.vmem [shape: f32[32,384], index: 2, kind: input, shape index: {}]
  %s3 = inlined_call_operand.vmem [shape: f32[128,32], index: 3, kind: input, shape index: {}]
  %s4 = inlined_call_operand.vmem [shape: f32[32,128], index: 4, kind: input, shape index: {}]
  %s5 = inlined_call_operand.vmem [shape: f32[1,128], index: 5, kind: input, shape index: {}]
  %s6 = inlined_call_operand.vmem [shape: f32[128,32], index: 6, kind: input, shape index: {}]
  %s7 = inlined_call_operand.vmem [shape: f32[8,32], index: 7, kind: input, shape index: {}]
  %s8 = inlined_call_operand.hbm [shape: f32[16,32], index: 8, kind: output, shape index: {}]
  %s9 = sld [smem:[#allocation0]]
  $region65: #{tpu_custom_call.1} parent=0
    _
  %s11 = ssub.s32 1, %s9
  %s12 = scalar_select 0, %s11, %s9
  $region1: #{tpu_custom_call.1} parent=0
    #allocation2 [shape = 'u8[8192]{0}', space=vmem, size = 0x2000, scoped, tag = 'output window, operand 0']
    #allocation3 [shape = 's32[2]{0}', space=sflag, size = 0x8, scoped, tag = 'scoped memory for tpu_custom_call.1']
    %13 = vsyncpa [#allocation3], 0
    %s14 = scalar_lea.sflag [#allocation3], 1
    %15 = vsyncpa %s14, 0
    loop: start=0, step=1, limit=4
    $region2: #{tpu_custom_call.1} parent=1 // loop_pre_header
      _
    $region3: #{tpu_custom_call.1} parent=1 // loop_header
      %s17 = sphi 0, %s21
      %p18 = scmp.ge.s32.totalorder %s17, 4
      %s27 = sphi 0, %s29
      %s30 = sphi 0, %s27
      %s31 = sphi 0, %s30
      %s47 = sphi 0, %s31
      %s53 = sphi 0, %s55
      %s56 = sphi 0, %s53
      %s57 = sphi 0, %s56
      %s73 = sphi 0, %s57
      %s77 = sphi 0, %s77
      %s79 = sphi 0, %s77
      %s80 = sphi 0, %s79
      %s94 = sphi 0, %s80
      %s98 = sphi 0, %s98
      %s100 = sphi 0, %s98
      %s101 = sphi 0, %s100
      %s115 = sphi 0, %s101
      %s119 = sphi 0, %s119
      %s121 = sphi 0, %s119
      %s122 = sphi 0, %s121
      %s136 = sphi 0, %s122
      %s140 = sphi 0, %s140
      %s142 = sphi 0, %s140
      %s143 = sphi 0, %s142
      %s157 = sphi 0, %s143
      %s161 = sphi 0, %s161
      %s163 = sphi 0, %s161
      %s164 = sphi 0, %s163
      %s178 = sphi 0, %s164
      %s182 = sphi 0, %s182
      %s184 = sphi 0, %s182
      %s185 = sphi 0, %s184
      %s199 = sphi 0, %s185
      %s205 = sphi 0, %s207
      %s208 = sphi 0, %s205
      %s209 = sphi 0, %s208
      %s225 = sphi 0, %s209
    $region4: #{tpu_custom_call.1} parent=1 // loop_header_branch
      %20 = sbr.rel (%p18) target = $region8
    $region5: #{tpu_custom_call.1} parent=1 // loop_body
      %s22 = ssub.s32 %s17, 1
      %s23 = ssub.s32 %s17, 2
      %s24 = sadd.s32 %s17, 1
      %s25 = ssub.s32 %s17, %s24
      %p26 = scmp.eq.s32.totalorder %s25, 0
      %s28 = sadd.s32 %s27, 1
      %s29 = scalar_select %p26, %s27, %s28
      %p32 = pneg %p26
      %p33 = scmp.eq.s32.totalorder %s17, 1
      %p34 = por %p32, %p33
      %p35 = scmp.ne.s32.totalorder %s27, %s30
      %p36 = scmp.eq.s32.totalorder %s17, 0
      %p37 = por %p35, %p36
      %p38 = scmp.ne.s32.totalorder %s27, %s30
      %p39 = scmp.eq.s32.totalorder %s22, 1
      %p40 = por %p38, %p39
      %p41 = scmp.ne.s32.totalorder %s30, %s31
      %p42 = scmp.eq.s32.totalorder %s22, 0
      %p43 = por %p41, %p42
      %p44 = scmp.ne.s32.totalorder %s30, %s31
      %p45 = scmp.eq.s32.totalorder %s23, 1
      %p46 = por %p44, %p45
      %p48 = scmp.ne.s32.totalorder %s31, %s47
      %p49 = scmp.eq.s32.totalorder %s23, 0
      %p50 = por %p48, %p49
      %s51 = ssub.s32 %s17, %s24
      %p52 = scmp.eq.s32.totalorder %s51, 0
      %s54 = sadd.s32 %s53, 1
      %s55 = scalar_select %p52, %s53, %s54
      %p58 = pneg %p52
      %p59 = scmp.eq.s32.totalorder %s17, 1
      %p60 = por %p58, %p59
      %p61 = scmp.ne.s32.totalorder %s53, %s56
      %p62 = scmp.eq.s32.totalorder %s17, 0
      %p63 = por %p61, %p62
      %p64 = scmp.ne.s32.totalorder %s53, %s56
      %p65 = scmp.eq.s32.totalorder %s22, 1
      %p66 = por %p64, %p65
      %p67 = scmp.ne.s32.totalorder %s56, %s57
      %p68 = scmp.eq.s32.totalorder %s22, 0
      %p69 = por %p67, %p68
      %p70 = scmp.ne.s32.totalorder %s56, %s57
      %p71 = scmp.eq.s32.totalorder %s23, 1
      %p72 = por %p70, %p71
      %p74 = scmp.ne.s32.totalorder %s57, %s73
      %p75 = scmp.eq.s32.totalorder %s23, 0
      %p76 = por %p74, %p75
      %s78 = sadd.s32 %s77, 1
      %p81 = scmp.eq.s32.totalorder %s17, 1
      %p82 = scmp.ne.s32.totalorder %s77, %s79
      %p83 = scmp.eq.s32.totalorder %s17, 0
      %p84 = por %p82, %p83
      %p85 = scmp.ne.s32.totalorder %s77, %s79
      %p86 = scmp.eq.s32.totalorder %s22, 1
      %p87 = por %p85, %p86
      %p88 = scmp.ne.s32.totalorder %s79, %s80
      %p89 = scmp.eq.s32.totalorder %s22, 0
      %p90 = por %p88, %p89
      %p91 = scmp.ne.s32.totalorder %s79, %s80
      %p92 = scmp.eq.s32.totalorder %s23, 1
      %p93 = por %p91, %p92
      %p95 = scmp.ne.s32.totalorder %s80, %s94
      %p96 = scmp.eq.s32.totalorder %s23, 0
      %p97 = por %p95, %p96
      %s99 = sadd.s32 %s98, 1
      %p102 = scmp.eq.s32.totalorder %s17, 1
      %p103 = scmp.ne.s32.totalorder %s98, %s100
      %p104 = scmp.eq.s32.totalorder %s17, 0
      %p105 = por %p103, %p104
      %p106 = scmp.ne.s32.totalorder %s98, %s100
      %p107 = scmp.eq.s32.totalorder %s22, 1
      %p108 = por %p106, %p107
      %p109 = scmp.ne.s32.totalorder %s100, %s101
      %p110 = scmp.eq.s32.totalorder %s22, 0
      %p111 = por %p109, %p110
      %p112 = scmp.ne.s32.totalorder %s100, %s101
      %p113 = scmp.eq.s32.totalorder %s23, 1
      %p114 = por %p112, %p113
      %p116 = scmp.ne.s32.totalorder %s101, %s115
      %p117 = scmp.eq.s32.totalorder %s23, 0
      %p118 = por %p116, %p117
      %s120 = sadd.s32 %s119, 1
      %p123 = scmp.eq.s32.totalorder %s17, 1
      %p124 = scmp.ne.s32.totalorder %s119, %s121
      %p125 = scmp.eq.s32.totalorder %s17, 0
      %p126 = por %p124, %p125
      %p127 = scmp.ne.s32.totalorder %s119, %s121
      %p128 = scmp.eq.s32.totalorder %s22, 1
      %p129 = por %p127, %p128
      %p130 = scmp.ne.s32.totalorder %s121, %s122
      %p131 = scmp.eq.s32.totalorder %s22, 0
      %p132 = por %p130, %p131
      %p133 = scmp.ne.s32.totalorder %s121, %s122
      %p134 = scmp.eq.s32.totalorder %s23, 1
      %p135 = por %p133, %p134
      %p137 = scmp.ne.s32.totalorder %s122, %s136
      %p138 = scmp.eq.s32.totalorder %s23, 0
      %p139 = por %p137, %p138
      %s141 = sadd.s32 %s140, 1
      %p144 = scmp.eq.s32.totalorder %s17, 1
      %p145 = scmp.ne.s32.totalorder %s140, %s142
      %p146 = scmp.eq.s32.totalorder %s17, 0
      %p147 = por %p145, %p146
      %p148 = scmp.ne.s32.totalorder %s140, %s142
      %p149 = scmp.eq.s32.totalorder %s22, 1
      %p150 = por %p148, %p149
      %p151 = scmp.ne.s32.totalorder %s142, %s143
      %p152 = scmp.eq.s32.totalorder %s22, 0
      %p153 = por %p151, %p152
      %p154 = scmp.ne.s32.totalorder %s142, %s143
      %p155 = scmp.eq.s32.totalorder %s23, 1
      %p156 = por %p154, %p155
      %p158 = scmp.ne.s32.totalorder %s143, %s157
      %p159 = scmp.eq.s32.totalorder %s23, 0
      %p160 = por %p158, %p159
      %s162 = sadd.s32 %s161, 1
      %p165 = scmp.eq.s32.totalorder %s17, 1
      %p166 = scmp.ne.s32.totalorder %s161, %s163
      %p167 = scmp.eq.s32.totalorder %s17, 0
      %p168 = por %p166, %p167
      %p169 = scmp.ne.s32.totalorder %s161, %s163
      %p170 = scmp.eq.s32.totalorder %s22, 1
      %p171 = por %p169, %p170
      %p172 = scmp.ne.s32.totalorder %s163, %s164
      %p173 = scmp.eq.s32.totalorder %s22, 0
      %p174 = por %p172, %p173
      %p175 = scmp.ne.s32.totalorder %s163, %s164
      %p176 = scmp.eq.s32.totalorder %s23, 1
      %p177 = por %p175, %p176
      %p179 = scmp.ne.s32.totalorder %s164, %s178
      %p180 = scmp.eq.s32.totalorder %s23, 0
      %p181 = por %p179, %p180
      %s183 = sadd.s32 %s182, 1
      %p186 = scmp.eq.s32.totalorder %s17, 1
      %p187 = scmp.ne.s32.totalorder %s182, %s184
      %p188 = scmp.eq.s32.totalorder %s17, 0
      %p189 = por %p187, %p188
      %p190 = scmp.ne.s32.totalorder %s182, %s184
      %p191 = scmp.eq.s32.totalorder %s22, 1
      %p192 = por %p190, %p191
      %p193 = scmp.ne.s32.totalorder %s184, %s185
      %p194 = scmp.eq.s32.totalorder %s22, 0
      %p195 = por %p193, %p194
      %p196 = scmp.ne.s32.totalorder %s184, %s185
      %p197 = scmp.eq.s32.totalorder %s23, 1
      %p198 = por %p196, %p197
      %p200 = scmp.ne.s32.totalorder %s185, %s199
      %p201 = scmp.eq.s32.totalorder %s23, 0
      %p202 = por %p200, %p201
      %s203 = ssub.s32 %s17, %s24
      %p204 = scmp.eq.s32.totalorder %s203, 0
      %s206 = sadd.s32 %s205, 1
      %s207 = scalar_select %p204, %s205, %s206
      %p210 = pneg %p204
      %p211 = scmp.eq.s32.totalorder %s17, 1
      %p212 = por %p210, %p211
      %p213 = scmp.ne.s32.totalorder %s205, %s208
      %p214 = scmp.eq.s32.totalorder %s17, 0
      %p215 = por %p213, %p214
      %p216 = scmp.ne.s32.totalorder %s205, %s208
      %p217 = scmp.eq.s32.totalorder %s22, 1
      %p218 = por %p216, %p217
      %p219 = scmp.ne.s32.totalorder %s208, %s209
      %p220 = scmp.eq.s32.totalorder %s22, 0
      %p221 = por %p219, %p220
      %p222 = scmp.ne.s32.totalorder %s208, %s209
      %p223 = scmp.eq.s32.totalorder %s23, 1
      %p224 = por %p222, %p223
      %p226 = scmp.ne.s32.totalorder %s209, %s225
      %p227 = scmp.eq.s32.totalorder %s23, 0
      %p228 = por %p226, %p227
      %p229 = scmp.le.s32.totalorder 1, %s17
      %p230 = scmp.lt.s32.totalorder %s17, 3
      %p231 = pnand %p229, %p230
      %p232 = pneg %p231
      // Predicated region
      $region9: #{tpu_custom_call.1} parent=5 // pred_check
        _
      $region10: #{tpu_custom_call.1} parent=5 // pred_check_branch
        %234 = sbr.rel (%p231) target = $region12
      $region11: #{tpu_custom_call.1} parent=5 // pred_region
        %s235 = ssub.s32 %s17, 1
        // Predicated region
        $region13: #{tpu_custom_call.1} parent=11 // pred_check
          %p236 = pneg %p90
        $region14: #{tpu_custom_call.1} parent=11 // pred_check_branch
          %238 = sbr.rel (%p236) target = $region16
        $region15: #{tpu_custom_call.1} parent=11 // pred_region
          _
        $region16: #{tpu_custom_call.1} parent=11 // pred_fallthru
          _
        // Predicated region
        $region17: #{tpu_custom_call.1} parent=11 // pred_check
          %p239 = pneg %p111
        $region18: #{tpu_custom_call.1} parent=11 // pred_check_branch
          %241 = sbr.rel (%p239) target = $region20
        $region19: #{tpu_custom_call.1} parent=11 // pred_region
          _
        $region20: #{tpu_custom_call.1} parent=11 // pred_fallthru
          _
        // Predicated region
        $region21: #{tpu_custom_call.1} parent=11 // pred_check
          %p242 = pneg %p132
        $region22: #{tpu_custom_call.1} parent=11 // pred_check_branch
          %244 = sbr.rel (%p242) target = $region24
        $region23: #{tpu_custom_call.1} parent=11 // pred_region
          _
        $region24: #{tpu_custom_call.1} parent=11 // pred_fallthru
          _
        // Predicated region
        $region25: #{tpu_custom_call.1} parent=11 // pred_check
          %p245 = pneg %p153
        $region26: #{tpu_custom_call.1} parent=11 // pred_check_branch
          %247 = sbr.rel (%p245) target = $region28
        $region27: #{tpu_custom_call.1} parent=11 // pred_region
          _
        $region28: #{tpu_custom_call.1} parent=11 // pred_fallthru
          _
        // Predicated region
        $region29: #{tpu_custom_call.1} parent=11 // pred_check
          %p248 = pneg %p174
        $region30: #{tpu_custom_call.1} parent=11 // pred_check_branch
          %250 = sbr.rel (%p248) target = $region32
        $region31: #{tpu_custom_call.1} parent=11 // pred_region
          _
        $region32: #{tpu_custom_call.1} parent=11 // pred_fallthru
          _
        // Predicated region
        $region33: #{tpu_custom_call.1} parent=11 // pred_check
          %p251 = pneg %p195
        $region34: #{tpu_custom_call.1} parent=11 // pred_check_branch
          %253 = sbr.rel (%p251) target = $region36
        $region35: #{tpu_custom_call.1} parent=11 // pred_region
          _
        $region36: #{tpu_custom_call.1} parent=11 // pred_fallthru
          _
      $region12: #{tpu_custom_call.1} parent=5 // pred_fallthru
        _
      %p254 = scmp.lt.s32.totalorder %s17, 2
      // Predicated region
      $region37: #{tpu_custom_call.1} parent=5 // pred_check
        %p255 = pneg %p254
      $region38: #{tpu_custom_call.1} parent=5 // pred_check_branch
        %257 = sbr.rel (%p255) target = $region40
      $region39: #{tpu_custom_call.1} parent=5 // pred_region
        // Predicated region
        $region41: #{tpu_custom_call.1} parent=39 // pred_check
          %p258 = pneg %p37
        $region42: #{tpu_custom_call.1} parent=39 // pred_check_branch
          %260 = sbr.rel (%p258) target = $region44
        $region43: #{tpu_custom_call.1} parent=39 // pred_region
          %p261 = scmp.lt.s32.totalorder %s17, 1
          %s262 = scalar_select %p261, %s17, 1
          %s263 = smul.addr %s262, 8
          %s264 = scalar_lea.vmem %s0, %s263
        $region44: #{tpu_custom_call.1} parent=39 // pred_fallthru
          _
        // Predicated region
        $region45: #{tpu_custom_call.1} parent=39 // pred_check
          %p265 = pneg %p63
        $region46: #{tpu_custom_call.1} parent=39 // pred_check_branch
          %267 = sbr.rel (%p265) target = $region48
        $region47: #{tpu_custom_call.1} parent=39 // pred_region
          %p268 = scmp.lt.s32.totalorder %s17, 1
          %s269 = scalar_select %p268, %s17, 1
          %s270 = smul.addr %s269, 8
          %s271 = scalar_lea.vmem %s1, %s270
        $region48: #{tpu_custom_call.1} parent=39 // pred_fallthru
          _
      $region40: #{tpu_custom_call.1} parent=5 // pred_fallthru
        _
      %p272 = scmp.le.s32.totalorder 1, %s17
      %p273 = scmp.lt.s32.totalorder %s17, 3
      %p274 = pnand %p272, %p273
      %p275 = pneg %p274
      // Predicated region
      $region49: #{tpu_custom_call.1} parent=5 // pred_check
        _
      $region50: #{tpu_custom_call.1} parent=5 // pred_check_branch
        %277 = sbr.rel (%p274) target = $region52
      $region51: #{tpu_custom_call.1} parent=5 // pred_region
        %s278 = ssub.s32 %s17, 1
        %p279 = scmp.lt.s32.totalorder %s22, 1
        %s280 = scalar_select %p279, %s22, 1
        %s281 = smul.addr %s280, 8
        %s282 = scalar_lea.vmem %s0, %s281
        %p283 = pneg %p43
        %p284 = pneg %p40
        %p285 = scmp.lt.s32.totalorder %s22, 1
        %s286 = scalar_select %p285, %s22, 1
        %s287 = smul.addr %s286, 8
        %s288 = scalar_lea.vmem %s1, %s287
        %p289 = pneg %p69
        %p290 = pneg %p66
        %p291 = pneg %p90
        %p292 = pneg %p87
        %p293 = pneg %p111
        %p294 = pneg %p108
        %p295 = pneg %p132
        %p296 = pneg %p129
        %p297 = pneg %p153
        %p298 = pneg %p150
        %p299 = pneg %p174
        %p300 = pneg %p171
        %p301 = pneg %p195
        %p302 = pneg %p192
        %p303 = pneg %p221
        %p304 = pneg %p218
        %s305 = sand.u32 %s208, 1
        %s306 = scalar_lea.sflag [#allocation3], %s305
        %s307 = sand.u32 %s208, 1
        %s308 = smul.addr %s307, 8
        %s309 = scalar_lea.vmem [#allocation2], %s308
        %p310 = scmp.lt.s32.totalorder %s22, 1
        %s311 = scalar_select %p310, %s22, 1
        %s312 = smul.addr %s311, 8
        %s313 = scalar_lea.vmem %s0, %s312
        %p314 = scmp.lt.s32.totalorder %s22, 1
        %s315 = scalar_select %p314, %s22, 1
        %s316 = smul.addr %s315, 8
        %s317 = scalar_lea.vmem %s1, %s316
        %v318 = vld [vmem:[%s313] sm:$0xff]
        %v319 = vld [vmem:[%s317] sm:$0xff]
        %v320 = vld [vmem:[%s7] sm:$0xff]
        %v321 = vld [vmem:[%s2] sm:$0xff]
        %v322 = vld [vmem:[%s2 + $0x8] sm:$0xff]
        %v323 = vld [vmem:[%s2 + $0x10] sm:$0xff]
        %v324 = vld [vmem:[%s2 + $0x18] sm:$0xff]
        %v325 = vld [vmem:[%s2 + $0x20] sm:$0xff]
        %v326 = vld [vmem:[%s2 + $0x28] sm:$0xff]
        %v327 = vld [vmem:[%s2 + $0x30] sm:$0xff]
        %v328 = vld [vmem:[%s2 + $0x38] sm:$0xff]
        %v329 = vld [vmem:[%s2 + $0x40] sm:$0xff]
        %v330 = vld [vmem:[%s2 + $0x48] sm:$0xff]
        %v331 = vld [vmem:[%s2 + $0x50] sm:$0xff]
        %v332 = vld [vmem:[%s2 + $0x58] sm:$0xff]
        %vm333 = vcmask 261120
        %v335 = vsel %vm333, %v318, 0
        %337 = vmatprep.subr.mxu0 %v322
        %338 = vmatpush1.msra.mxu0 %v321
        %339 = vmatprep.subr.mxu0 %v325
        %340 = vmatpush1.msra.mxu0 %v324
        %341 = vmatprep.subr.mxu0 %v328
        %342 = vmatpush1.msra.mxu0 %v327
        %343 = vmatprep.subr.mxu0 %v331
        %344 = vmatpush1.msra.mxu0 %v330
        %345 = vmatprep.subr.mxu0 0.0
        %346 = vmatpush1.msra.mxu0 0.0
        %347 = vmatprep.subr.mxu0 0.0
        %348 = vmatpush1.msra.mxu0 0.0
        %349 = vmatprep.subr.mxu0 0.0
        %350 = vmatpush1.msra.mxu0 0.0
        %351 = vmatprep.subr.mxu0 0.0
        %352 = vmatpush1.msra.mxu0 0.0
        %353 = vmatprep.subr.mxu0 0.0
        %354 = vmatpush1.msra.mxu0 0.0
        %355 = vmatprep.subr.mxu0 0.0
        %356 = vmatpush1.msra.mxu0 0.0
        %357 = vmatprep.subr.mxu0 0.0
        %358 = vmatpush1.msra.mxu0 0.0
        %359 = vmatprep.subr.mxu0 0.0
        %360 = vmatpush1.msra.mxu0 0.0
        %361 = vmatprep.subr.mxu0 0.0
        %362 = vmatpush1.msra.mxu0 0.0
        %363 = vmatprep.subr.mxu0 0.0
        %364 = vmatpush1.msra.mxu0 0.0
        %365 = vmatprep.subr.mxu0 0.0
        %366 = vmatpush1.msra.mxu0 0.0
        %367 = vmatprep.subr.mxu0 0.0
        %368 = vmatpush1.msra.mxu0 0.0
        %369 = vmatprep.subr.mxu0 0.0
        %370 = vmatpush1.msra.mxu0 0.0
        %371 = vmatprep.subr.mxu0 0.0
        %372 = vmatpush1.msra.mxu0 0.0
        %373 = vmatprep.subr.mxu0 0.0
        %374 = vmatpush1.msra.mxu0 0.0
        %375 = vmatprep.subr.mxu0 0.0
        %376 = vmatpush1.msra.mxu0 0.0
        %377 = vmatprep.subr.mxu0 0.0
        %378 = vmatpush1.msra.mxu0 0.0
        %379 = vmatprep.subr.mxu0 0.0
        %380 = vmatpush1.msra.mxu0 0.0
        %381 = vmatprep.subr.mxu0 0.0
        %382 = vmatpush1.msra.mxu0 0.0
        %383 = vmatprep.subr.mxu0 0.0
        %384 = vmatpush1.msra.mxu0 0.0
        %385 = vmatprep.subr.mxu0 0.0
        %386 = vmatpush1.msra.mxu0 0.0
        %387 = vmatprep.subr.mxu0 0.0
        %388 = vmatpush1.msra.mxu0 0.0
        %389 = vmatprep.subr.mxu0 0.0
        %390 = vmatpush1.msra.mxu0 0.0
        %391 = vmatprep.subr.mxu0 0.0
        %392 = vmatpush1.msra.mxu0 0.0
        %393 = vmatprep.subr.mxu0 0.0
        %394 = vmatpush1.msra.mxu0 0.0
        %395 = vmatprep.subr.mxu0 0.0
        %396 = vmatpush1.msra.mxu0 0.0
        %397 = vmatprep.subr.mxu0 0.0
        %398 = vmatpush1.msra.mxu0 0.0
        %399 = vmatprep.subr.mxu0 0.0
        %400 = vmatpush1.msra.mxu0 0.0
        %401 = vmatprep.mubr.f32.mxu0 0.0
        %402 = vmatmul.mubr.f32.gmra.mrb[0].mxu0 %v335
        %v403 = vpop.f32.mrb[0].mxu0
        %v404 = vadd.f32 0.0, %v403
        %v405 = vpop.f32.mrb[0].mxu0
        %v406 = vadd.f32 0.0, %v405
        %407 = vdwg.mxu0
        %408 = vmatprep.subr.mxu0 0.0
        %409 = vmatpush1.msra.mxu0 %v323
        %410 = vmatprep.subr.mxu0 0.0
        %411 = vmatpush1.msra.mxu0 %v326
        %412 = vmatprep.subr.mxu0 0.0
        %413 = vmatpush1.msra.mxu0 %v329
        %414 = vmatprep.subr.mxu0 0.0
        %415 = vmatpush1.msra.mxu0 %v332
        %416 = vmatprep.subr.mxu0 0.0
        %417 = vmatpush1.msra.mxu0 0.0
        %418 = vmatprep.subr.mxu0 0.0
        %419 = vmatpush1.msra.mxu0 0.0
        %420 = vmatprep.subr.mxu0 0.0
        %421 = vmatpush1.msra.mxu0 0.0
        %422 = vmatprep.subr.mxu0 0.0
        %423 = vmatpush1.msra.mxu0 0.0
        %424 = vmatprep.subr.mxu0 0.0
        %425 = vmatpush1.msra.mxu0 0.0
        %426 = vmatprep.subr.mxu0 0.0
        %427 = vmatpush1.msra.mxu0 0.0
        %428 = vmatprep.subr.mxu0 0.0
        %429 = vmatpush1.msra.mxu0 0.0
        %430 = vmatprep.subr.mxu0 0.0
        %431 = vmatpush1.msra.mxu0 0.0
        %432 = vmatprep.subr.mxu0 0.0
        %433 = vmatpush1.msra.mxu0 0.0
        %434 = vmatprep.subr.mxu0 0.0
        %435 = vmatpush1.msra.mxu0 0.0
        %436 = vmatprep.subr.mxu0 0.0
        %437 = vmatpush1.msra.mxu0 0.0
        %438 = vmatprep.subr.mxu0 0.0
        %439 = vmatpush1.msra.mxu0 0.0
        %440 = vmatprep.subr.mxu0 0.0
        %441 = vmatpush1.msra.mxu0 0.0
        %442 = vmatprep.subr.mxu0 0.0
        %443 = vmatpush1.msra.mxu0 0.0
        %444 = vmatprep.subr.mxu0 0.0
        %445 = vmatpush1.msra.mxu0 0.0
        %446 = vmatprep.subr.mxu0 0.0
        %447 = vmatpush1.msra.mxu0 0.0
        %448 = vmatprep.subr.mxu0 0.0
        %449 = vmatpush1.msra.mxu0 0.0
        %450 = vmatprep.subr.mxu0 0.0
        %451 = vmatpush1.msra.mxu0 0.0
        %452 = vmatprep.subr.mxu0 0.0
        %453 = vmatpush1.msra.mxu0 0.0
        %454 = vmatprep.subr.mxu0 0.0
        %455 = vmatpush1.msra.mxu0 0.0
        %456 = vmatprep.subr.mxu0 0.0
        %457 = vmatpush1.msra.mxu0 0.0
        %458 = vmatprep.subr.mxu0 0.0
        %459 = vmatpush1.msra.mxu0 0.0
        %460 = vmatprep.subr.mxu0 0.0
        %461 = vmatpush1.msra.mxu0 0.0
        %462 = vmatprep.subr.mxu0 0.0
        %463 = vmatpush1.msra.mxu0 0.0
        %464 = vmatprep.subr.mxu0 0.0
        %465 = vmatpush1.msra.mxu0 0.0
        %466 = vmatprep.subr.mxu0 0.0
        %467 = vmatpush1.msra.mxu0 0.0
        %468 = vmatprep.subr.mxu0 0.0
        %469 = vmatpush1.msra.mxu0 0.0
        %470 = vmatprep.subr.mxu0 0.0
        %471 = vmatpush1.msra.mxu0 0.0
        %472 = vmatprep.mubr.f32.mxu0 0.0
        %473 = vmatmul.mubr.f32.gmra.mrb[0].mxu0 %v335
        %v474 = vpop.f32.mrb[0].mxu0
        %v475 = vadd.f32 0.0, %v474
        %v476 = vpop.f32.mrb[0].mxu0
        %477 = vdwg.mxu0
        %v478 = vld [vmem:[%s3] sm:$0xff]
        %v479 = vld [vmem:[%s3 + $0x8] sm:$0xff]
        %v480 = vld [vmem:[%s3 + $0x10] sm:$0xff]
        %v481 = vld [vmem:[%s3 + $0x18] sm:$0xff]
        %v482 = vld [vmem:[%s3 + $0x20] sm:$0xff]
        %v483 = vld [vmem:[%s3 + $0x28] sm:$0xff]
        %v484 = vld [vmem:[%s3 + $0x30] sm:$0xff]
        %v485 = vld [vmem:[%s3 + $0x38] sm:$0xff]
        %v486 = vld [vmem:[%s3 + $0x40] sm:$0xff]
        %v487 = vld [vmem:[%s3 + $0x48] sm:$0xff]
        %v488 = vld [vmem:[%s3 + $0x50] sm:$0xff]
        %v489 = vld [vmem:[%s3 + $0x58] sm:$0xff]
        %v490 = vld [vmem:[%s3 + $0x60] sm:$0xff]
        %v491 = vld [vmem:[%s3 + $0x68] sm:$0xff]
        %v492 = vld [vmem:[%s3 + $0x70] sm:$0xff]
        %v493 = vld [vmem:[%s3 + $0x78] sm:$0xff]
        %v495 = vsel %vm333, %v404, 0
        %v498 = vsel %vm333, %v406, 0
        %500 = vmatprep.subr.mxu0 0.0
        %501 = vmatpush1.xpose.msra.mxu0 %v498
        %502 = vmatprep.subr.mxu0 0.0
        %503 = vmatpush1.xpose.msra.mxu0 0.0
        %504 = vmatprep.subr.mxu0 0.0
        %505 = vmatpush1.xpose.msra.mxu0 0.0
        %506 = vmatprep.subr.mxu0 0.0
        %507 = vmatpush1.xpose.msra.mxu0 0.0
        %508 = vmatprep.subr.mxu0 0.0
        %509 = vmatpush1.xpose.msra.mxu0 0.0
        %510 = vmatprep.subr.mxu0 0.0
        %511 = vmatpush1.xpose.msra.mxu0 0.0
        %512 = vmatprep.subr.mxu0 0.0
        %513 = vmatpush1.xpose.msra.mxu0 0.0
        %514 = vmatprep.subr.mxu0 0.0
        %515 = vmatpush1.xpose.msra.mxu0 0.0
        %516 = vmatprep.subr.mxu0 0.0
        %517 = vmatpush1.xpose.msra.mxu0 0.0
        %518 = vmatprep.subr.mxu0 0.0
        %519 = vmatpush1.xpose.msra.mxu0 0.0
        %520 = vmatprep.subr.mxu0 0.0
        %521 = vmatpush1.xpose.msra.mxu0 0.0
        %522 = vmatprep.subr.mxu0 0.0
        %523 = vmatpush1.xpose.msra.mxu0 0.0
        %524 = vmatprep.subr.mxu0 0.0
        %525 = vmatpush1.xpose.msra.mxu0 0.0
        %526 = vmatprep.subr.mxu0 0.0
        %527 = vmatpush1.xpose.msra.mxu0 0.0
        %528 = vmatprep.subr.mxu0 0.0
        %529 = vmatpush1.xpose.msra.mxu0 0.0
        %530 = vmatprep.subr.mxu0 0.0
        %531 = vmatpush1.xpose.msra.mxu0 0.0
        %532 = vmatprep.subr.mxu0 0.0
        %533 = vmatpush1.xpose.msra.mxu0 0.0
        %534 = vmatprep.subr.mxu0 0.0
        %535 = vmatpush1.xpose.msra.mxu0 0.0
        %536 = vmatprep.subr.mxu0 0.0
        %537 = vmatpush1.xpose.msra.mxu0 0.0
        %538 = vmatprep.subr.mxu0 0.0
        %539 = vmatpush1.xpose.msra.mxu0 0.0
        %540 = vmatprep.subr.mxu0 0.0
        %541 = vmatpush1.xpose.msra.mxu0 0.0
        %542 = vmatprep.subr.mxu0 0.0
        %543 = vmatpush1.xpose.msra.mxu0 0.0
        %544 = vmatprep.subr.mxu0 0.0
        %545 = vmatpush1.xpose.msra.mxu0 0.0
        %546 = vmatprep.subr.mxu0 0.0
        %547 = vmatpush1.xpose.msra.mxu0 0.0
        %548 = vmatprep.subr.mxu0 0.0
        %549 = vmatpush1.xpose.msra.mxu0 0.0
        %550 = vmatprep.subr.mxu0 0.0
        %551 = vmatpush1.xpose.msra.mxu0 0.0
        %552 = vmatprep.subr.mxu0 0.0
        %553 = vmatpush1.xpose.msra.mxu0 0.0
        %554 = vmatprep.subr.mxu0 0.0
        %555 = vmatpush1.xpose.msra.mxu0 0.0
        %556 = vmatprep.subr.mxu0 0.0
        %557 = vmatpush1.xpose.msra.mxu0 0.0
        %558 = vmatprep.subr.mxu0 0.0
        %559 = vmatpush1.xpose.msra.mxu0 0.0
        %560 = vmatprep.subr.mxu0 0.0
        %561 = vmatpush1.xpose.msra.mxu0 0.0
        %562 = vmatprep.subr.mxu0 0.0
        %563 = vmatpush1.xpose.msra.mxu0 0.0
        %564 = vmatprep.mubr.f32.mxu0 0.0
        %565 = vmatmul.mubr.f32.gmra.mrb[0].mxu0 %v495
        %v566 = vpop.f32.mrb[0].mxu0
        %v567 = vadd.f32 0.0, %v566
        %v568 = vpop.f32.mrb[0].mxu0
        %569 = vdwg.mxu0
        %vm570 = vcmask 64512
        %v571 = vsel %vm570, %v567, -inf
        %572 = vmax.xlane.f32.xlu0 %v571
        %v573 = vpop.xlane.xlu0 %572
        %v574 = vsub.f32 %v567, %v573
        %v575 = vmul.f32 %v574, 1.442695
        %v576 = vpow.pop %v575
        %v577 = vsel %vm570, %v576, 0.0
        %578 = vadd.xlane.f32.xlu0 %v577
        %v579 = vpop.xlane.xlu0 %578
        %v580 = vrcp.pop %v579
        %v582 = vsel %vm570, %v576, 0
        %584 = vmatprep.subr.mxu0 0.0
        %585 = vmatpush1.msra.mxu0 %v475
        %586 = vmatprep.subr.mxu0 0.0
        %587 = vmatpush1.msra.mxu0 0.0
        %588 = vmatprep.subr.mxu0 0.0
        %589 = vmatpush1.msra.mxu0 0.0
        %590 = vmatprep.subr.mxu0 0.0
        %591 = vmatpush1.msra.mxu0 0.0
        %592 = vmatprep.subr.mxu0 0.0
        %593 = vmatpush1.msra.mxu0 0.0
        %594 = vmatprep.subr.mxu0 0.0
        %595 = vmatpush1.msra.mxu0 0.0
        %596 = vmatprep.subr.mxu0 0.0
        %597 = vmatpush1.msra.mxu0 0.0
        %598 = vmatprep.subr.mxu0 0.0
        %599 = vmatpush1.msra.mxu0 0.0
        %600 = vmatprep.subr.mxu0 0.0
        %601 = vmatpush1.msra.mxu0 0.0
        %602 = vmatprep.subr.mxu0 0.0
        %603 = vmatpush1.msra.mxu0 0.0
        %604 = vmatprep.subr.mxu0 0.0
        %605 = vmatpush1.msra.mxu0 0.0
        %606 = vmatprep.subr.mxu0 0.0
        %607 = vmatpush1.msra.mxu0 0.0
        %608 = vmatprep.subr.mxu0 0.0
        %609 = vmatpush1.msra.mxu0 0.0
        %610 = vmatprep.subr.mxu0 0.0
        %611 = vmatpush1.msra.mxu0 0.0
        %612 = vmatprep.subr.mxu0 0.0
        %613 = vmatpush1.msra.mxu0 0.0
        %614 = vmatprep.subr.mxu0 0.0
        %615 = vmatpush1.msra.mxu0 0.0
        %616 = vmatprep.subr.mxu0 0.0
        %617 = vmatpush1.msra.mxu0 0.0
        %618 = vmatprep.subr.mxu0 0.0
        %619 = vmatpush1.msra.mxu0 0.0
        %620 = vmatprep.subr.mxu0 0.0
        %621 = vmatpush1.msra.mxu0 0.0
        %622 = vmatprep.subr.mxu0 0.0
        %623 = vmatpush1.msra.mxu0 0.0
        %624 = vmatprep.subr.mxu0 0.0
        %625 = vmatpush1.msra.mxu0 0.0
        %626 = vmatprep.subr.mxu0 0.0
        %627 = vmatpush1.msra.mxu0 0.0
        %628 = vmatprep.subr.mxu0 0.0
        %629 = vmatpush1.msra.mxu0 0.0
        %630 = vmatprep.subr.mxu0 0.0
        %631 = vmatpush1.msra.mxu0 0.0
        %632 = vmatprep.subr.mxu0 0.0
        %633 = vmatpush1.msra.mxu0 0.0
        %634 = vmatprep.subr.mxu0 0.0
        %635 = vmatpush1.msra.mxu0 0.0
        %636 = vmatprep.subr.mxu0 0.0
        %637 = vmatpush1.msra.mxu0 0.0
        %638 = vmatprep.subr.mxu0 0.0
        %639 = vmatpush1.msra.mxu0 0.0
        %640 = vmatprep.subr.mxu0 0.0
        %641 = vmatpush1.msra.mxu0 0.0
        %642 = vmatprep.subr.mxu0 0.0
        %643 = vmatpush1.msra.mxu0 0.0
        %644 = vmatprep.subr.mxu0 0.0
        %645 = vmatpush1.msra.mxu0 0.0
        %646 = vmatprep.subr.mxu0 0.0
        %647 = vmatpush1.msra.mxu0 0.0
        %648 = vmatprep.mubr.f32.mxu0 0.0
        %649 = vmatmul.mubr.f32.gmra.mrb[0].mxu0 %v582
        %v650 = vpop.f32.mrb[0].mxu0
        %v651 = vadd.f32 0.0, %v650
        %v652 = vpop.f32.mrb[0].mxu0
        %653 = vdwg.mxu0
        %v654 = vmul.f32 %v651, %v580
        %655 = vrot.lane.b32.xlu0 %v404, 96
        %v656 = vpop.permute.xlu0 %655
        %657 = vrot.lane.b32.xlu0 %v406, 96
        %v658 = vpop.permute.xlu0 %657
        %v659 = vsel %vm333, %v656, 0
        %v661 = vsel %vm333, %v658, 0
        %663 = vmatprep.subr.mxu0 0.0
        %664 = vmatpush1.xpose.msra.mxu0 %v661
        %665 = vmatprep.subr.mxu0 0.0
        %666 = vmatpush1.xpose.msra.mxu0 0.0
        %667 = vmatprep.subr.mxu0 0.0
        %668 = vmatpush1.xpose.msra.mxu0 0.0
        %669 = vmatprep.subr.mxu0 0.0
        %670 = vmatpush1.xpose.msra.mxu0 0.0
        %671 = vmatprep.subr.mxu0 0.0
        %672 = vmatpush1.xpose.msra.mxu0 0.0
        %673 = vmatprep.subr.mxu0 0.0
        %674 = vmatpush1.xpose.msra.mxu0 0.0
        %675 = vmatprep.subr.mxu0 0.0
        %676 = vmatpush1.xpose.msra.mxu0 0.0
        %677 = vmatprep.subr.mxu0 0.0
        %678 = vmatpush1.xpose.msra.mxu0 0.0
        %679 = vmatprep.subr.mxu0 0.0
        %680 = vmatpush1.xpose.msra.mxu0 0.0
        %681 = vmatprep.subr.mxu0 0.0
        %682 = vmatpush1.xpose.msra.mxu0 0.0
        %683 = vmatprep.subr.mxu0 0.0
        %684 = vmatpush1.xpose.msra.mxu0 0.0
        %685 = vmatprep.subr.mxu0 0.0
        %686 = vmatpush1.xpose.msra.mxu0 0.0
        %687 = vmatprep.subr.mxu0 0.0
        %688 = vmatpush1.xpose.msra.mxu0 0.0
        %689 = vmatprep.subr.mxu0 0.0
        %690 = vmatpush1.xpose.msra.mxu0 0.0
        %691 = vmatprep.subr.mxu0 0.0
        %692 = vmatpush1.xpose.msra.mxu0 0.0
        %693 = vmatprep.subr.mxu0 0.0
        %694 = vmatpush1.xpose.msra.mxu0 0.0
        %695 = vmatprep.subr.mxu0 0.0
        %696 = vmatpush1.xpose.msra.mxu0 0.0
        %697 = vmatprep.subr.mxu0 0.0
        %698 = vmatpush1.xpose.msra.mxu0 0.0
        %699 = vmatprep.subr.mxu0 0.0
        %700 = vmatpush1.xpose.msra.mxu0 0.0
        %701 = vmatprep.subr.mxu0 0.0
        %702 = vmatpush1.xpose.msra.mxu0 0.0
        %703 = vmatprep.subr.mxu0 0.0
        %704 = vmatpush1.xpose.msra.mxu0 0.0
        %705 = vmatprep.subr.mxu0 0.0
        %706 = vmatpush1.xpose.msra.mxu0 0.0
        %707 = vmatprep.subr.mxu0 0.0
        %708 = vmatpush1.xpose.msra.mxu0 0.0
        %709 = vmatprep.subr.mxu0 0.0
        %710 = vmatpush1.xpose.msra.mxu0 0.0
        %711 = vmatprep.subr.mxu0 0.0
        %712 = vmatpush1.xpose.msra.mxu0 0.0
        %713 = vmatprep.subr.mxu0 0.0
        %714 = vmatpush1.xpose.msra.mxu0 0.0
        %715 = vmatprep.subr.mxu0 0.0
        %716 = vmatpush1.xpose.msra.mxu0 0.0
        %717 = vmatprep.subr.mxu0 0.0
        %718 = vmatpush1.xpose.msra.mxu0 0.0
        %719 = vmatprep.subr.mxu0 0.0
        %720 = vmatpush1.xpose.msra.mxu0 0.0
        %721 = vmatprep.subr.mxu0 0.0
        %722 = vmatpush1.xpose.msra.mxu0 0.0
        %723 = vmatprep.subr.mxu0 0.0
        %724 = vmatpush1.xpose.msra.mxu0 0.0
        %725 = vmatprep.subr.mxu0 0.0
        %726 = vmatpush1.xpose.msra.mxu0 0.0
        %727 = vmatprep.mubr.f32.mxu0 0.0
        %728 = vmatmul.mubr.f32.gmra.mrb[0].mxu0 %v659
        %v729 = vpop.f32.mrb[0].mxu0
        %v730 = vadd.f32 0.0, %v729
        %v731 = vpop.f32.mrb[0].mxu0
        %732 = vdwg.mxu0
        %v733 = vsel %vm570, %v730, -inf
        %734 = vmax.xlane.f32.xlu0 %v733
        %v735 = vpop.xlane.xlu0 %734
        %v736 = vsub.f32 %v730, %v735
        %v737 = vmul.f32 %v736, 1.442695
        %v738 = vpow.pop %v737
        %v739 = vsel %vm570, %v738, 0.0
        %740 = vadd.xlane.f32.xlu0 %v739
        %v741 = vpop.xlane.xlu0 %740
        %v742 = vrcp.pop %v741
        %744 = vrot.lane.b32.xlu0 %v475, 96
        %v745 = vpop.permute.xlu0 %744
        %v748 = vsel %vm570, %v738, 0
        %750 = vmatprep.subr.mxu0 0.0
        %751 = vmatpush1.msra.mxu0 %v745
        %752 = vmatprep.subr.mxu0 0.0
        %753 = vmatpush1.msra.mxu0 0.0
        %754 = vmatprep.subr.mxu0 0.0
        %755 = vmatpush1.msra.mxu0 0.0
        %756 = vmatprep.subr.mxu0 0.0
        %757 = vmatpush1.msra.mxu0 0.0
        %758 = vmatprep.subr.mxu0 0.0
        %759 = vmatpush1.msra.mxu0 0.0
        %760 = vmatprep.subr.mxu0 0.0
        %761 = vmatpush1.msra.mxu0 0.0
        %762 = vmatprep.subr.mxu0 0.0
        %763 = vmatpush1.msra.mxu0 0.0
        %764 = vmatprep.subr.mxu0 0.0
        %765 = vmatpush1.msra.mxu0 0.0
        %766 = vmatprep.subr.mxu0 0.0
        %767 = vmatpush1.msra.mxu0 0.0
        %768 = vmatprep.subr.mxu0 0.0
        %769 = vmatpush1.msra.mxu0 0.0
        %770 = vmatprep.subr.mxu0 0.0
        %771 = vmatpush1.msra.mxu0 0.0
        %772 = vmatprep.subr.mxu0 0.0
        %773 = vmatpush1.msra.mxu0 0.0
        %774 = vmatprep.subr.mxu0 0.0
        %775 = vmatpush1.msra.mxu0 0.0
        %776 = vmatprep.subr.mxu0 0.0
        %777 = vmatpush1.msra.mxu0 0.0
        %778 = vmatprep.subr.mxu0 0.0
        %779 = vmatpush1.msra.mxu0 0.0
        %780 = vmatprep.subr.mxu0 0.0
        %781 = vmatpush1.msra.mxu0 0.0
        %782 = vmatprep.subr.mxu0 0.0
        %783 = vmatpush1.msra.mxu0 0.0
        %784 = vmatprep.subr.mxu0 0.0
        %785 = vmatpush1.msra.mxu0 0.0
        %786 = vmatprep.subr.mxu0 0.0
        %787 = vmatpush1.msra.mxu0 0.0
        %788 = vmatprep.subr.mxu0 0.0
        %789 = vmatpush1.msra.mxu0 0.0
        %790 = vmatprep.subr.mxu0 0.0
        %791 = vmatpush1.msra.mxu0 0.0
        %792 = vmatprep.subr.mxu0 0.0
        %793 = vmatpush1.msra.mxu0 0.0
        %794 = vmatprep.subr.mxu0 0.0
        %795 = vmatpush1.msra.mxu0 0.0
        %796 = vmatprep.subr.mxu0 0.0
        %797 = vmatpush1.msra.mxu0 0.0
        %798 = vmatprep.subr.mxu0 0.0
        %799 = vmatpush1.msra.mxu0 0.0
        %800 = vmatprep.subr.mxu0 0.0
        %801 = vmatpush1.msra.mxu0 0.0
        %802 = vmatprep.subr.mxu0 0.0
        %803 = vmatpush1.msra.mxu0 0.0
        %804 = vmatprep.subr.mxu0 0.0
        %805 = vmatpush1.msra.mxu0 0.0
        %806 = vmatprep.subr.mxu0 0.0
        %807 = vmatpush1.msra.mxu0 0.0
        %808 = vmatprep.subr.mxu0 0.0
        %809 = vmatpush1.msra.mxu0 0.0
        %810 = vmatprep.subr.mxu0 0.0
        %811 = vmatpush1.msra.mxu0 0.0
        %812 = vmatprep.subr.mxu0 0.0
        %813 = vmatpush1.msra.mxu0 0.0
        %814 = vmatprep.mubr.f32.mxu0 0.0
        %815 = vmatmul.mubr.f32.gmra.mrb[0].mxu0 %v748
        %v816 = vpop.f32.mrb[0].mxu0
        %v817 = vadd.f32 0.0, %v816
        %v818 = vpop.f32.mrb[0].mxu0
        %819 = vdwg.mxu0
        %v820 = vmul.f32 %v817, %v742
        %v822 = vsel %vm333, %v820, 0
        %824 = vmatprep.subr.mxu0 0.0
        %825 = vmatpush1.msra.mxu0 %v482
        %826 = vmatprep.subr.mxu0 0.0
        %827 = vmatpush1.msra.mxu0 %v483
        %828 = vmatprep.subr.mxu0 0.0
        %829 = vmatpush1.msra.mxu0 %v484
        %830 = vmatprep.subr.mxu0 0.0
        %831 = vmatpush1.msra.mxu0 %v485
        %832 = vmatprep.subr.mxu0 0.0
        %833 = vmatpush1.msra.mxu0 0.0
        %834 = vmatprep.subr.mxu0 0.0
        %835 = vmatpush1.msra.mxu0 0.0
        %836 = vmatprep.subr.mxu0 0.0
        %837 = vmatpush1.msra.mxu0 0.0
        %838 = vmatprep.subr.mxu0 0.0
        %839 = vmatpush1.msra.mxu0 0.0
        %840 = vmatprep.subr.mxu0 0.0
        %841 = vmatpush1.msra.mxu0 0.0
        %842 = vmatprep.subr.mxu0 0.0
        %843 = vmatpush1.msra.mxu0 0.0
        %844 = vmatprep.subr.mxu0 0.0
        %845 = vmatpush1.msra.mxu0 0.0
        %846 = vmatprep.subr.mxu0 0.0
        %847 = vmatpush1.msra.mxu0 0.0
        %848 = vmatprep.subr.mxu0 0.0
        %849 = vmatpush1.msra.mxu0 0.0
        %850 = vmatprep.subr.mxu0 0.0
        %851 = vmatpush1.msra.mxu0 0.0
        %852 = vmatprep.subr.mxu0 0.0
        %853 = vmatpush1.msra.mxu0 0.0
        %854 = vmatprep.subr.mxu0 0.0
        %855 = vmatpush1.msra.mxu0 0.0
        %856 = vmatprep.subr.mxu0 0.0
        %857 = vmatpush1.msra.mxu0 0.0
        %858 = vmatprep.subr.mxu0 0.0
        %859 = vmatpush1.msra.mxu0 0.0
        %860 = vmatprep.subr.mxu0 0.0
        %861 = vmatpush1.msra.mxu0 0.0
        %862 = vmatprep.subr.mxu0 0.0
        %863 = vmatpush1.msra.mxu0 0.0
        %864 = vmatprep.subr.mxu0 0.0
        %865 = vmatpush1.msra.mxu0 0.0
        %866 = vmatprep.subr.mxu0 0.0
        %867 = vmatpush1.msra.mxu0 0.0
        %868 = vmatprep.subr.mxu0 0.0
        %869 = vmatpush1.msra.mxu0 0.0
        %870 = vmatprep.subr.mxu0 0.0
        %871 = vmatpush1.msra.mxu0 0.0
        %872 = vmatprep.subr.mxu0 0.0
        %873 = vmatpush1.msra.mxu0 0.0
        %874 = vmatprep.subr.mxu0 0.0
        %875 = vmatpush1.msra.mxu0 0.0
        %876 = vmatprep.subr.mxu0 0.0
        %877 = vmatpush1.msra.mxu0 0.0
        %878 = vmatprep.subr.mxu0 0.0
        %879 = vmatpush1.msra.mxu0 0.0
        %880 = vmatprep.subr.mxu0 0.0
        %881 = vmatpush1.msra.mxu0 0.0
        %882 = vmatprep.subr.mxu0 0.0
        %883 = vmatpush1.msra.mxu0 0.0
        %884 = vmatprep.subr.mxu0 0.0
        %885 = vmatpush1.msra.mxu0 0.0
        %886 = vmatprep.subr.mxu0 0.0
        %887 = vmatpush1.msra.mxu0 0.0
        %888 = vmatprep.mubr.f32.mxu0 0.0
        %889 = vmatmul.mubr.f32.gmra.mrb[0].mxu0 %v822
        %v890 = vpop.f32.mrb[0].mxu0
        %v891 = vadd.f32 0.0, %v890
        %v892 = vpop.f32.mrb[0].mxu0
        %893 = vdwg.mxu0
        %v895 = vsel %vm333, %v654, 0
        %897 = vmatprep.subr.mxu0 0.0
        %898 = vmatpush1.msra.mxu0 %v478
        %899 = vmatprep.subr.mxu0 0.0
        %900 = vmatpush1.msra.mxu0 %v479
        %901 = vmatprep.subr.mxu0 0.0
        %902 = vmatpush1.msra.mxu0 %v480
        %903 = vmatprep.subr.mxu0 0.0
        %904 = vmatpush1.msra.mxu0 %v481
        %905 = vmatprep.subr.mxu0 0.0
        %906 = vmatpush1.msra.mxu0 0.0
        %907 = vmatprep.subr.mxu0 0.0
        %908 = vmatpush1.msra.mxu0 0.0
        %909 = vmatprep.subr.mxu0 0.0
        %910 = vmatpush1.msra.mxu0 0.0
        %911 = vmatprep.subr.mxu0 0.0
        %912 = vmatpush1.msra.mxu0 0.0
        %913 = vmatprep.subr.mxu0 0.0
        %914 = vmatpush1.msra.mxu0 0.0
        %915 = vmatprep.subr.mxu0 0.0
        %916 = vmatpush1.msra.mxu0 0.0
        %917 = vmatprep.subr.mxu0 0.0
        %918 = vmatpush1.msra.mxu0 0.0
        %919 = vmatprep.subr.mxu0 0.0
        %920 = vmatpush1.msra.mxu0 0.0
        %921 = vmatprep.subr.mxu0 0.0
        %922 = vmatpush1.msra.mxu0 0.0
        %923 = vmatprep.subr.mxu0 0.0
        %924 = vmatpush1.msra.mxu0 0.0
        %925 = vmatprep.subr.mxu0 0.0
        %926 = vmatpush1.msra.mxu0 0.0
        %927 = vmatprep.subr.mxu0 0.0
        %928 = vmatpush1.msra.mxu0 0.0
        %929 = vmatprep.subr.mxu0 0.0
        %930 = vmatpush1.msra.mxu0 0.0
        %931 = vmatprep.subr.mxu0 0.0
        %932 = vmatpush1.msra.mxu0 0.0
        %933 = vmatprep.subr.mxu0 0.0
        %934 = vmatpush1.msra.mxu0 0.0
        %935 = vmatprep.subr.mxu0 0.0
        %936 = vmatpush1.msra.mxu0 0.0
        %937 = vmatprep.subr.mxu0 0.0
        %938 = vmatpush1.msra.mxu0 0.0
        %939 = vmatprep.subr.mxu0 0.0
        %940 = vmatpush1.msra.mxu0 0.0
        %941 = vmatprep.subr.mxu0 0.0
        %942 = vmatpush1.msra.mxu0 0.0
        %943 = vmatprep.subr.mxu0 0.0
        %944 = vmatpush1.msra.mxu0 0.0
        %945 = vmatprep.subr.mxu0 0.0
        %946 = vmatpush1.msra.mxu0 0.0
        %947 = vmatprep.subr.mxu0 0.0
        %948 = vmatpush1.msra.mxu0 0.0
        %949 = vmatprep.subr.mxu0 0.0
        %950 = vmatpush1.msra.mxu0 0.0
        %951 = vmatprep.subr.mxu0 0.0
        %952 = vmatpush1.msra.mxu0 0.0
        %953 = vmatprep.subr.mxu0 0.0
        %954 = vmatpush1.msra.mxu0 0.0
        %955 = vmatprep.subr.mxu0 0.0
        %956 = vmatpush1.msra.mxu0 0.0
        %957 = vmatprep.subr.mxu0 0.0
        %958 = vmatpush1.msra.mxu0 0.0
        %959 = vmatprep.subr.mxu0 0.0
        %960 = vmatpush1.msra.mxu0 0.0
        %961 = vmatprep.mubr.f32.mxu0 0.0
        %962 = vmatmul.mubr.f32.gmra.mrb[0].mxu0 %v895
        %v963 = vpop.f32.mrb[0].mxu0
        %v964 = vadd.f32 %v891, %v963
        %v965 = vpop.f32.mrb[0].mxu0
        %966 = vdwg.mxu0
        %967 = vrot.lane.b32.xlu0 %v404, 64
        %v968 = vpop.permute.xlu0 %967
        %969 = vrot.lane.b32.xlu0 %v406, 64
        %v970 = vpop.permute.xlu0 %969
        %v971 = vsel %vm333, %v968, 0
        %v973 = vsel %vm333, %v970, 0
        %975 = vmatprep.subr.mxu0 0.0
        %976 = vmatpush1.xpose.msra.mxu0 %v973
        %977 = vmatprep.subr.mxu0 0.0
        %978 = vmatpush1.xpose.msra.mxu0 0.0
        %979 = vmatprep.subr.mxu0 0.0
        %980 = vmatpush1.xpose.msra.mxu0 0.0
        %981 = vmatprep.subr.mxu0 0.0
        %982 = vmatpush1.xpose.msra.mxu0 0.0
        %983 = vmatprep.subr.mxu0 0.0
        %984 = vmatpush1.xpose.msra.mxu0 0.0
        %985 = vmatprep.subr.mxu0 0.0
        %986 = vmatpush1.xpose.msra.mxu0 0.0
        %987 = vmatprep.subr.mxu0 0.0
        %988 = vmatpush1.xpose.msra.mxu0 0.0
        %989 = vmatprep.subr.mxu0 0.0
        %990 = vmatpush1.xpose.msra.mxu0 0.0
        %991 = vmatprep.subr.mxu0 0.0
        %992 = vmatpush1.xpose.msra.mxu0 0.0
        %993 = vmatprep.subr.mxu0 0.0
        %994 = vmatpush1.xpose.msra.mxu0 0.0
        %995 = vmatprep.subr.mxu0 0.0
        %996 = vmatpush1.xpose.msra.mxu0 0.0
        %997 = vmatprep.subr.mxu0 0.0
        %998 = vmatpush1.xpose.msra.mxu0 0.0
        %999 = vmatprep.subr.mxu0 0.0
        %1000 = vmatpush1.xpose.msra.mxu0 0.0
        %1001 = vmatprep.subr.mxu0 0.0
        %1002 = vmatpush1.xpose.msra.mxu0 0.0
        %1003 = vmatprep.subr.mxu0 0.0
        %1004 = vmatpush1.xpose.msra.mxu0 0.0
        %1005 = vmatprep.subr.mxu0 0.0
        %1006 = vmatpush1.xpose.msra.mxu0 0.0
        %1007 = vmatprep.subr.mxu0 0.0
        %1008 = vmatpush1.xpose.msra.mxu0 0.0
        %1009 = vmatprep.subr.mxu0 0.0
        %1010 = vmatpush1.xpose.msra.mxu0 0.0
        %1011 = vmatprep.subr.mxu0 0.0
        %1012 = vmatpush1.xpose.msra.mxu0 0.0
        %1013 = vmatprep.subr.mxu0 0.0
        %1014 = vmatpush1.xpose.msra.mxu0 0.0
        %1015 = vmatprep.subr.mxu0 0.0
        %1016 = vmatpush1.xpose.msra.mxu0 0.0
        %1017 = vmatprep.subr.mxu0 0.0
        %1018 = vmatpush1.xpose.msra.mxu0 0.0
        %1019 = vmatprep.subr.mxu0 0.0
        %1020 = vmatpush1.xpose.msra.mxu0 0.0
        %1021 = vmatprep.subr.mxu0 0.0
        %1022 = vmatpush1.xpose.msra.mxu0 0.0
        %1023 = vmatprep.subr.mxu0 0.0
        %1024 = vmatpush1.xpose.msra.mxu0 0.0
        %1025 = vmatprep.subr.mxu0 0.0
        %1026 = vmatpush1.xpose.msra.mxu0 0.0
        %1027 = vmatprep.subr.mxu0 0.0
        %1028 = vmatpush1.xpose.msra.mxu0 0.0
        %1029 = vmatprep.subr.mxu0 0.0
        %1030 = vmatpush1.xpose.msra.mxu0 0.0
        %1031 = vmatprep.subr.mxu0 0.0
        %1032 = vmatpush1.xpose.msra.mxu0 0.0
        %1033 = vmatprep.subr.mxu0 0.0
        %1034 = vmatpush1.xpose.msra.mxu0 0.0
        %1035 = vmatprep.subr.mxu0 0.0
        %1036 = vmatpush1.xpose.msra.mxu0 0.0
        %1037 = vmatprep.subr.mxu0 0.0
        %1038 = vmatpush1.xpose.msra.mxu0 0.0
        %1039 = vmatprep.mubr.f32.mxu0 0.0
        %1040 = vmatmul.mubr.f32.gmra.mrb[0].mxu0 %v971
        %v1041 = vpop.f32.mrb[0].mxu0
        %v1042 = vadd.f32 0.0, %v1041
        %v1043 = vpop.f32.mrb[0].mxu0
        %1044 = vdwg.mxu0
        %v1045 = vsel %vm570, %v1042, -inf
        %1046 = vmax.xlane.f32.xlu0 %v1045
        %v1047 = vpop.xlane.xlu0 %1046
        %v1048 = vsub.f32 %v1042, %v1047
        %v1049 = vmul.f32 %v1048, 1.442695
        %v1050 = vpow.pop %v1049
        %v1051 = vsel %vm570, %v1050, 0.0
        %1052 = vadd.xlane.f32.xlu0 %v1051
        %v1053 = vpop.xlane.xlu0 %1052
        %v1054 = vrcp.pop %v1053
        %1055 = vrot.lane.b32.xlu0 %v475, 64
        %v1056 = vpop.permute.xlu0 %1055
        %v1059 = vsel %vm570, %v1050, 0
        %1061 = vmatprep.subr.mxu0 0.0
        %1062 = vmatpush1.msra.mxu0 %v1056
        %1063 = vmatprep.subr.mxu0 0.0
        %1064 = vmatpush1.msra.mxu0 0.0
        %1065 = vmatprep.subr.mxu0 0.0
        %1066 = vmatpush1.msra.mxu0 0.0
        %1067 = vmatprep.subr.mxu0 0.0
        %1068 = vmatpush1.msra.mxu0 0.0
        %1069 = vmatprep.subr.mxu0 0.0
        %1070 = vmatpush1.msra.mxu0 0.0
        %1071 = vmatprep.subr.mxu0 0.0
        %1072 = vmatpush1.msra.mxu0 0.0
        %1073 = vmatprep.subr.mxu0 0.0
        %1074 = vmatpush1.msra.mxu0 0.0
        %1075 = vmatprep.subr.mxu0 0.0
        %1076 = vmatpush1.msra.mxu0 0.0
        %1077 = vmatprep.subr.mxu0 0.0
        %1078 = vmatpush1.msra.mxu0 0.0
        %1079 = vmatprep.subr.mxu0 0.0
        %1080 = vmatpush1.msra.mxu0 0.0
        %1081 = vmatprep.subr.mxu0 0.0
        %1082 = vmatpush1.msra.mxu0 0.0
        %1083 = vmatprep.subr.mxu0 0.0
        %1084 = vmatpush1.msra.mxu0 0.0
        %1085 = vmatprep.subr.mxu0 0.0
        %1086 = vmatpush1.msra.mxu0 0.0
        %1087 = vmatprep.subr.mxu0 0.0
        %1088 = vmatpush1.msra.mxu0 0.0
        %1089 = vmatprep.subr.mxu0 0.0
        %1090 = vmatpush1.msra.mxu0 0.0
        %1091 = vmatprep.subr.mxu0 0.0
        %1092 = vmatpush1.msra.mxu0 0.0
        %1093 = vmatprep.subr.mxu0 0.0
        %1094 = vmatpush1.msra.mxu0 0.0
        %1095 = vmatprep.subr.mxu0 0.0
        %1096 = vmatpush1.msra.mxu0 0.0
        %1097 = vmatprep.subr.mxu0 0.0
        %1098 = vmatpush1.msra.mxu0 0.0
        %1099 = vmatprep.subr.mxu0 0.0
        %1100 = vmatpush1.msra.mxu0 0.0
        %1101 = vmatprep.subr.mxu0 0.0
        %1102 = vmatpush1.msra.mxu0 0.0
        %1103 = vmatprep.subr.mxu0 0.0
        %1104 = vmatpush1.msra.mxu0 0.0
        %1105 = vmatprep.subr.mxu0 0.0
        %1106 = vmatpush1.msra.mxu0 0.0
        %1107 = vmatprep.subr.mxu0 0.0
        %1108 = vmatpush1.msra.mxu0 0.0
        %1109 = vmatprep.subr.mxu0 0.0
        %1110 = vmatpush1.msra.mxu0 0.0
        %1111 = vmatprep.subr.mxu0 0.0
        %1112 = vmatpush1.msra.mxu0 0.0
        %1113 = vmatprep.subr.mxu0 0.0
        %1114 = vmatpush1.msra.mxu0 0.0
        %1115 = vmatprep.subr.mxu0 0.0
        %1116 = vmatpush1.msra.mxu0 0.0
        %1117 = vmatprep.subr.mxu0 0.0
        %1118 = vmatpush1.msra.mxu0 0.0
        %1119 = vmatprep.subr.mxu0 0.0
        %1120 = vmatpush1.msra.mxu0 0.0
        %1121 = vmatprep.subr.mxu0 0.0
        %1122 = vmatpush1.msra.mxu0 0.0
        %1123 = vmatprep.subr.mxu0 0.0
        %1124 = vmatpush1.msra.mxu0 0.0
        %1125 = vmatprep.mubr.f32.mxu0 0.0
        %1126 = vmatmul.mubr.f32.gmra.mrb[0].mxu0 %v1059
        %v1127 = vpop.f32.mrb[0].mxu0
        %v1128 = vadd.f32 0.0, %v1127
        %v1129 = vpop.f32.mrb[0].mxu0
        %1130 = vdwg.mxu0
        %v1131 = vmul.f32 %v1128, %v1054
        %v1133 = vsel %vm333, %v1131, 0
        %1135 = vmatprep.subr.mxu0 0.0
        %1136 = vmatpush1.msra.mxu0 %v486
        %1137 = vmatprep.subr.mxu0 0.0
        %1138 = vmatpush1.msra.mxu0 %v487
        %1139 = vmatprep.subr.mxu0 0.0
        %1140 = vmatpush1.msra.mxu0 %v488
        %1141 = vmatprep.subr.mxu0 0.0
        %1142 = vmatpush1.msra.mxu0 %v489
        %1143 = vmatprep.subr.mxu0 0.0
        %1144 = vmatpush1.msra.mxu0 0.0
        %1145 = vmatprep.subr.mxu0 0.0
        %1146 = vmatpush1.msra.mxu0 0.0
        %1147 = vmatprep.subr.mxu0 0.0
        %1148 = vmatpush1.msra.mxu0 0.0
        %1149 = vmatprep.subr.mxu0 0.0
        %1150 = vmatpush1.msra.mxu0 0.0
        %1151 = vmatprep.subr.mxu0 0.0
        %1152 = vmatpush1.msra.mxu0 0.0
        %1153 = vmatprep.subr.mxu0 0.0
        %1154 = vmatpush1.msra.mxu0 0.0
        %1155 = vmatprep.subr.mxu0 0.0
        %1156 = vmatpush1.msra.mxu0 0.0
        %1157 = vmatprep.subr.mxu0 0.0
        %1158 = vmatpush1.msra.mxu0 0.0
        %1159 = vmatprep.subr.mxu0 0.0
        %1160 = vmatpush1.msra.mxu0 0.0
        %1161 = vmatprep.subr.mxu0 0.0
        %1162 = vmatpush1.msra.mxu0 0.0
        %1163 = vmatprep.subr.mxu0 0.0
        %1164 = vmatpush1.msra.mxu0 0.0
        %1165 = vmatprep.subr.mxu0 0.0
        %1166 = vmatpush1.msra.mxu0 0.0
        %1167 = vmatprep.subr.mxu0 0.0
        %1168 = vmatpush1.msra.mxu0 0.0
        %1169 = vmatprep.subr.mxu0 0.0
        %1170 = vmatpush1.msra.mxu0 0.0
        %1171 = vmatprep.subr.mxu0 0.0
        %1172 = vmatpush1.msra.mxu0 0.0
        %1173 = vmatprep.subr.mxu0 0.0
        %1174 = vmatpush1.msra.mxu0 0.0
        %1175 = vmatprep.subr.mxu0 0.0
        %1176 = vmatpush1.msra.mxu0 0.0
        %1177 = vmatprep.subr.mxu0 0.0
        %1178 = vmatpush1.msra.mxu0 0.0
        %1179 = vmatprep.subr.mxu0 0.0
        %1180 = vmatpush1.msra.mxu0 0.0
        %1181 = vmatprep.subr.mxu0 0.0
        %1182 = vmatpush1.msra.mxu0 0.0
        %1183 = vmatprep.subr.mxu0 0.0
        %1184 = vmatpush1.msra.mxu0 0.0
        %1185 = vmatprep.subr.mxu0 0.0
        %1186 = vmatpush1.msra.mxu0 0.0
        %1187 = vmatprep.subr.mxu0 0.0
        %1188 = vmatpush1.msra.mxu0 0.0
        %1189 = vmatprep.subr.mxu0 0.0
        %1190 = vmatpush1.msra.mxu0 0.0
        %1191 = vmatprep.subr.mxu0 0.0
        %1192 = vmatpush1.msra.mxu0 0.0
        %1193 = vmatprep.subr.mxu0 0.0
        %1194 = vmatpush1.msra.mxu0 0.0
        %1195 = vmatprep.subr.mxu0 0.0
        %1196 = vmatpush1.msra.mxu0 0.0
        %1197 = vmatprep.subr.mxu0 0.0
        %1198 = vmatpush1.msra.mxu0 0.0
        %1199 = vmatprep.mubr.f32.mxu0 0.0
        %1200 = vmatmul.mubr.f32.gmra.mrb[0].mxu0 %v1133
        %v1201 = vpop.f32.mrb[0].mxu0
        %v1202 = vadd.f32 0.0, %v1201
        %v1203 = vpop.f32.mrb[0].mxu0
        %1204 = vdwg.mxu0
        %v1205 = vadd.f32 %v964, %v1202
        %1206 = vrot.lane.b32.xlu0 %v404, 32
        %v1207 = vpop.permute.xlu0 %1206
        %1208 = vrot.lane.b32.xlu0 %v406, 32
        %v1209 = vpop.permute.xlu0 %1208
        %v1210 = vsel %vm333, %v1207, 0
        %v1212 = vsel %vm333, %v1209, 0
        %1214 = vmatprep.subr.mxu0 0.0
        %1215 = vmatpush1.xpose.msra.mxu0 %v1212
        %1216 = vmatprep.subr.mxu0 0.0
        %1217 = vmatpush1.xpose.msra.mxu0 0.0
        %1218 = vmatprep.subr.mxu0 0.0
        %1219 = vmatpush1.xpose.msra.mxu0 0.0
        %1220 = vmatprep.subr.mxu0 0.0
        %1221 = vmatpush1.xpose.msra.mxu0 0.0
        %1222 = vmatprep.subr.mxu0 0.0
        %1223 = vmatpush1.xpose.msra.mxu0 0.0
        %1224 = vmatprep.subr.mxu0 0.0
        %1225 = vmatpush1.xpose.msra.mxu0 0.0
        %1226 = vmatprep.subr.mxu0 0.0
        %1227 = vmatpush1.xpose.msra.mxu0 0.0
        %1228 = vmatprep.subr.mxu0 0.0
        %1229 = vmatpush1.xpose.msra.mxu0 0.0
        %1230 = vmatprep.subr.mxu0 0.0
        %1231 = vmatpush1.xpose.msra.mxu0 0.0
        %1232 = vmatprep.subr.mxu0 0.0
        %1233 = vmatpush1.xpose.msra.mxu0 0.0
        %1234 = vmatprep.subr.mxu0 0.0
        %1235 = vmatpush1.xpose.msra.mxu0 0.0
        %1236 = vmatprep.subr.mxu0 0.0
        %1237 = vmatpush1.xpose.msra.mxu0 0.0
        %1238 = vmatprep.subr.mxu0 0.0
        %1239 = vmatpush1.xpose.msra.mxu0 0.0
        %1240 = vmatprep.subr.mxu0 0.0
        %1241 = vmatpush1.xpose.msra.mxu0 0.0
        %1242 = vmatprep.subr.mxu0 0.0
        %1243 = vmatpush1.xpose.msra.mxu0 0.0
        %1244 = vmatprep.subr.mxu0 0.0
        %1245 = vmatpush1.xpose.msra.mxu0 0.0
        %1246 = vmatprep.subr.mxu0 0.0
        %1247 = vmatpush1.xpose.msra.mxu0 0.0
        %1248 = vmatprep.subr.mxu0 0.0
        %1249 = vmatpush1.xpose.msra.mxu0 0.0
        %1250 = vmatprep.subr.mxu0 0.0
        %1251 = vmatpush1.xpose.msra.mxu0 0.0
        %1252 = vmatprep.subr.mxu0 0.0
        %1253 = vmatpush1.xpose.msra.mxu0 0.0
        %1254 = vmatprep.subr.mxu0 0.0
        %1255 = vmatpush1.xpose.msra.mxu0 0.0
        %1256 = vmatprep.subr.mxu0 0.0
        %1257 = vmatpush1.xpose.msra.mxu0 0.0
        %1258 = vmatprep.subr.mxu0 0.0
        %1259 = vmatpush1.xpose.msra.mxu0 0.0
        %1260 = vmatprep.subr.mxu0 0.0
        %1261 = vmatpush1.xpose.msra.mxu0 0.0
        %1262 = vmatprep.subr.mxu0 0.0
        %1263 = vmatpush1.xpose.msra.mxu0 0.0
        %1264 = vmatprep.subr.mxu0 0.0
        %1265 = vmatpush1.xpose.msra.mxu0 0.0
        %1266 = vmatprep.subr.mxu0 0.0
        %1267 = vmatpush1.xpose.msra.mxu0 0.0
        %1268 = vmatprep.subr.mxu0 0.0
        %1269 = vmatpush1.xpose.msra.mxu0 0.0
        %1270 = vmatprep.subr.mxu0 0.0
        %1271 = vmatpush1.xpose.msra.mxu0 0.0
        %1272 = vmatprep.subr.mxu0 0.0
        %1273 = vmatpush1.xpose.msra.mxu0 0.0
        %1274 = vmatprep.subr.mxu0 0.0
        %1275 = vmatpush1.xpose.msra.mxu0 0.0
        %1276 = vmatprep.subr.mxu0 0.0
        %1277 = vmatpush1.xpose.msra.mxu0 0.0
        %1278 = vmatprep.mubr.f32.mxu0 0.0
        %1279 = vmatmul.mubr.f32.gmra.mrb[0].mxu0 %v1210
        %v1280 = vpop.f32.mrb[0].mxu0
        %v1281 = vadd.f32 0.0, %v1280
        %v1282 = vpop.f32.mrb[0].mxu0
        %1283 = vdwg.mxu0
        %v1284 = vsel %vm570, %v1281, -inf
        %1285 = vmax.xlane.f32.xlu0 %v1284
        %v1286 = vpop.xlane.xlu0 %1285
        %v1287 = vsub.f32 %v1281, %v1286
        %v1288 = vmul.f32 %v1287, 1.442695
        %v1289 = vpow.pop %v1288
        %v1290 = vsel %vm570, %v1289, 0.0
        %1291 = vadd.xlane.f32.xlu0 %v1290
        %v1292 = vpop.xlane.xlu0 %1291
        %v1293 = vrcp.pop %v1292
        %1294 = vrot.lane.b32.xlu0 %v475, 32
        %v1295 = vpop.permute.xlu0 %1294
        %v1298 = vsel %vm570, %v1289, 0
        %1300 = vmatprep.subr.mxu0 0.0
        %1301 = vmatpush1.msra.mxu0 %v1295
        %1302 = vmatprep.subr.mxu0 0.0
        %1303 = vmatpush1.msra.mxu0 0.0
        %1304 = vmatprep.subr.mxu0 0.0
        %1305 = vmatpush1.msra.mxu0 0.0
        %1306 = vmatprep.subr.mxu0 0.0
        %1307 = vmatpush1.msra.mxu0 0.0
        %1308 = vmatprep.subr.mxu0 0.0
        %1309 = vmatpush1.msra.mxu0 0.0
        %1310 = vmatprep.subr.mxu0 0.0
        %1311 = vmatpush1.msra.mxu0 0.0
        %1312 = vmatprep.subr.mxu0 0.0
        %1313 = vmatpush1.msra.mxu0 0.0
        %1314 = vmatprep.subr.mxu0 0.0
        %1315 = vmatpush1.msra.mxu0 0.0
        %1316 = vmatprep.subr.mxu0 0.0
        %1317 = vmatpush1.msra.mxu0 0.0
        %1318 = vmatprep.subr.mxu0 0.0
        %1319 = vmatpush1.msra.mxu0 0.0
        %1320 = vmatprep.subr.mxu0 0.0
        %1321 = vmatpush1.msra.mxu0 0.0
        %1322 = vmatprep.subr.mxu0 0.0
        %1323 = vmatpush1.msra.mxu0 0.0
        %1324 = vmatprep.subr.mxu0 0.0
        %1325 = vmatpush1.msra.mxu0 0.0
        %1326 = vmatprep.subr.mxu0 0.0
        %1327 = vmatpush1.msra.mxu0 0.0
        %1328 = vmatprep.subr.mxu0 0.0
        %1329 = vmatpush1.msra.mxu0 0.0
        %1330 = vmatprep.subr.mxu0 0.0
        %1331 = vmatpush1.msra.mxu0 0.0
        %1332 = vmatprep.subr.mxu0 0.0
        %1333 = vmatpush1.msra.mxu0 0.0
        %1334 = vmatprep.subr.mxu0 0.0
        %1335 = vmatpush1.msra.mxu0 0.0
        %1336 = vmatprep.subr.mxu0 0.0
        %1337 = vmatpush1.msra.mxu0 0.0
        %1338 = vmatprep.subr.mxu0 0.0
        %1339 = vmatpush1.msra.mxu0 0.0
        %1340 = vmatprep.subr.mxu0 0.0
        %1341 = vmatpush1.msra.mxu0 0.0
        %1342 = vmatprep.subr.mxu0 0.0
        %1343 = vmatpush1.msra.mxu0 0.0
        %1344 = vmatprep.subr.mxu0 0.0
        %1345 = vmatpush1.msra.mxu0 0.0
        %1346 = vmatprep.subr.mxu0 0.0
        %1347 = vmatpush1.msra.mxu0 0.0
        %1348 = vmatprep.subr.mxu0 0.0
        %1349 = vmatpush1.msra.mxu0 0.0
        %1350 = vmatprep.subr.mxu0 0.0
        %1351 = vmatpush1.msra.mxu0 0.0
        %1352 = vmatprep.subr.mxu0 0.0
        %1353 = vmatpush1.msra.mxu0 0.0
        %1354 = vmatprep.subr.mxu0 0.0
        %1355 = vmatpush1.msra.mxu0 0.0
        %1356 = vmatprep.subr.mxu0 0.0
        %1357 = vmatpush1.msra.mxu0 0.0
        %1358 = vmatprep.subr.mxu0 0.0
        %1359 = vmatpush1.msra.mxu0 0.0
        %1360 = vmatprep.subr.mxu0 0.0
        %1361 = vmatpush1.msra.mxu0 0.0
        %1362 = vmatprep.subr.mxu0 0.0
        %1363 = vmatpush1.msra.mxu0 0.0
        %1364 = vmatprep.mubr.f32.mxu0 0.0
        %1365 = vmatmul.mubr.f32.gmra.mrb[0].mxu0 %v1298
        %v1366 = vpop.f32.mrb[0].mxu0
        %v1367 = vadd.f32 0.0, %v1366
        %v1368 = vpop.f32.mrb[0].mxu0
        %1369 = vdwg.mxu0
        %v1370 = vmul.f32 %v1367, %v1293
        %v1372 = vsel %vm333, %v1370, 0
        %1374 = vmatprep.subr.mxu0 0.0
        %1375 = vmatpush1.msra.mxu0 %v490
        %1376 = vmatprep.subr.mxu0 0.0
        %1377 = vmatpush1.msra.mxu0 %v491
        %1378 = vmatprep.subr.mxu0 0.0
        %1379 = vmatpush1.msra.mxu0 %v492
        %1380 = vmatprep.subr.mxu0 0.0
        %1381 = vmatpush1.msra.mxu0 %v493
        %1382 = vmatprep.subr.mxu0 0.0
        %1383 = vmatpush1.msra.mxu0 0.0
        %1384 = vmatprep.subr.mxu0 0.0
        %1385 = vmatpush1.msra.mxu0 0.0
        %1386 = vmatprep.subr.mxu0 0.0
        %1387 = vmatpush1.msra.mxu0 0.0
        %1388 = vmatprep.subr.mxu0 0.0
        %1389 = vmatpush1.msra.mxu0 0.0
        %1390 = vmatprep.subr.mxu0 0.0
        %1391 = vmatpush1.msra.mxu0 0.0
        %1392 = vmatprep.subr.mxu0 0.0
        %1393 = vmatpush1.msra.mxu0 0.0
        %1394 = vmatprep.subr.mxu0 0.0
        %1395 = vmatpush1.msra.mxu0 0.0
        %1396 = vmatprep.subr.mxu0 0.0
        %1397 = vmatpush1.msra.mxu0 0.0
        %1398 = vmatprep.subr.mxu0 0.0
        %1399 = vmatpush1.msra.mxu0 0.0
        %1400 = vmatprep.subr.mxu0 0.0
        %1401 = vmatpush1.msra.mxu0 0.0
        %1402 = vmatprep.subr.mxu0 0.0
        %1403 = vmatpush1.msra.mxu0 0.0
        %1404 = vmatprep.subr.mxu0 0.0
        %1405 = vmatpush1.msra.mxu0 0.0
        %1406 = vmatprep.subr.mxu0 0.0
        %1407 = vmatpush1.msra.mxu0 0.0
        %1408 = vmatprep.subr.mxu0 0.0
        %1409 = vmatpush1.msra.mxu0 0.0
        %1410 = vmatprep.subr.mxu0 0.0
        %1411 = vmatpush1.msra.mxu0 0.0
        %1412 = vmatprep.subr.mxu0 0.0
        %1413 = vmatpush1.msra.mxu0 0.0
        %1414 = vmatprep.subr.mxu0 0.0
        %1415 = vmatpush1.msra.mxu0 0.0
        %1416 = vmatprep.subr.mxu0 0.0
        %1417 = vmatpush1.msra.mxu0 0.0
        %1418 = vmatprep.subr.mxu0 0.0
        %1419 = vmatpush1.msra.mxu0 0.0
        %1420 = vmatprep.subr.mxu0 0.0
        %1421 = vmatpush1.msra.mxu0 0.0
        %1422 = vmatprep.subr.mxu0 0.0
        %1423 = vmatpush1.msra.mxu0 0.0
        %1424 = vmatprep.subr.mxu0 0.0
        %1425 = vmatpush1.msra.mxu0 0.0
        %1426 = vmatprep.subr.mxu0 0.0
        %1427 = vmatpush1.msra.mxu0 0.0
        %1428 = vmatprep.subr.mxu0 0.0
        %1429 = vmatpush1.msra.mxu0 0.0
        %1430 = vmatprep.subr.mxu0 0.0
        %1431 = vmatpush1.msra.mxu0 0.0
        %1432 = vmatprep.subr.mxu0 0.0
        %1433 = vmatpush1.msra.mxu0 0.0
        %1434 = vmatprep.subr.mxu0 0.0
        %1435 = vmatpush1.msra.mxu0 0.0
        %1436 = vmatprep.subr.mxu0 0.0
        %1437 = vmatpush1.msra.mxu0 0.0
        %1438 = vmatprep.mubr.f32.mxu0 0.0
        %1439 = vmatmul.mubr.f32.gmra.mrb[0].mxu0 %v1372
        %v1440 = vpop.f32.mrb[0].mxu0
        %v1441 = vadd.f32 0.0, %v1440
        %v1442 = vpop.f32.mrb[0].mxu0
        %1443 = vdwg.mxu0
        %v1444 = vadd.f32 %v1205, %v1441
        %v1445 = vadd.f32 %v1444, %v318
        %v1446 = vadd.f32 %v1445, %v319
        %v1447 = vlaneseq
        %v1448 = vshrl.u32 %v1447, 7
        %v1449 = vsub.s32 0, %v1448
        %v1450 = vrot.slane %v320, %v1449
        %v1451 = vmul.f32 %v1446, %v1450
        %v1452 = vlaneseq
        %v1453 = vshrl.u32 %v1452, 7
        %v1454 = vsub.s32 1, %v1453
        %v1455 = vrot.slane %v320, %v1454
        %v1456 = vadd.f32 %v1451, %v1455
        %v1457 = vld [vmem:[%s4] sm:$0xff]
        %v1458 = vld [vmem:[%s4 + $0x8] sm:$0xff]
        %v1459 = vld [vmem:[%s4 + $0x10] sm:$0xff]
        %v1460 = vld [vmem:[%s4 + $0x18] sm:$0xff]
        %v1461 = vld [vmem:[%s5] sm:$0x1]
        %v1463 = vlaneseq
        %v1464 = vshrl.u32 %v1463, 7
        %v1465 = vsub.s32 0, %v1464
        %v1466 = vrot.slane %v1461, %v1465
        %v1469 = vsel %vm333, %v1456, 0
        %1471 = vmatprep.subr.mxu0 0.0
        %1472 = vmatpush1.msra.mxu0 %v1457
        %1473 = vmatprep.subr.mxu0 0.0
        %1474 = vmatpush1.msra.mxu0 %v1458
        %1475 = vmatprep.subr.mxu0 0.0
        %1476 = vmatpush1.msra.mxu0 %v1459
        %1477 = vmatprep.subr.mxu0 0.0
        %1478 = vmatpush1.msra.mxu0 %v1460
        %1479 = vmatprep.subr.mxu0 0.0
        %1480 = vmatpush1.msra.mxu0 0.0
        %1481 = vmatprep.subr.mxu0 0.0
        %1482 = vmatpush1.msra.mxu0 0.0
        %1483 = vmatprep.subr.mxu0 0.0
        %1484 = vmatpush1.msra.mxu0 0.0
        %1485 = vmatprep.subr.mxu0 0.0
        %1486 = vmatpush1.msra.mxu0 0.0
        %1487 = vmatprep.subr.mxu0 0.0
        %1488 = vmatpush1.msra.mxu0 0.0
        %1489 = vmatprep.subr.mxu0 0.0
        %1490 = vmatpush1.msra.mxu0 0.0
        %1491 = vmatprep.subr.mxu0 0.0
        %1492 = vmatpush1.msra.mxu0 0.0
        %1493 = vmatprep.subr.mxu0 0.0
        %1494 = vmatpush1.msra.mxu0 0.0
        %1495 = vmatprep.subr.mxu0 0.0
        %1496 = vmatpush1.msra.mxu0 0.0
        %1497 = vmatprep.subr.mxu0 0.0
        %1498 = vmatpush1.msra.mxu0 0.0
        %1499 = vmatprep.subr.mxu0 0.0
        %1500 = vmatpush1.msra.mxu0 0.0
        %1501 = vmatprep.subr.mxu0 0.0
        %1502 = vmatpush1.msra.mxu0 0.0
        %1503 = vmatprep.subr.mxu0 0.0
        %1504 = vmatpush1.msra.mxu0 0.0
        %1505 = vmatprep.subr.mxu0 0.0
        %1506 = vmatpush1.msra.mxu0 0.0
        %1507 = vmatprep.subr.mxu0 0.0
        %1508 = vmatpush1.msra.mxu0 0.0
        %1509 = vmatprep.subr.mxu0 0.0
        %1510 = vmatpush1.msra.mxu0 0.0
        %1511 = vmatprep.subr.mxu0 0.0
        %1512 = vmatpush1.msra.mxu0 0.0
        %1513 = vmatprep.subr.mxu0 0.0
        %1514 = vmatpush1.msra.mxu0 0.0
        %1515 = vmatprep.subr.mxu0 0.0
        %1516 = vmatpush1.msra.mxu0 0.0
        %1517 = vmatprep.subr.mxu0 0.0
        %1518 = vmatpush1.msra.mxu0 0.0
        %1519 = vmatprep.subr.mxu0 0.0
        %1520 = vmatpush1.msra.mxu0 0.0
        %1521 = vmatprep.subr.mxu0 0.0
        %1522 = vmatpush1.msra.mxu0 0.0
        %1523 = vmatprep.subr.mxu0 0.0
        %1524 = vmatpush1.msra.mxu0 0.0
        %1525 = vmatprep.subr.mxu0 0.0
        %1526 = vmatpush1.msra.mxu0 0.0
        %1527 = vmatprep.subr.mxu0 0.0
        %1528 = vmatpush1.msra.mxu0 0.0
        %1529 = vmatprep.subr.mxu0 0.0
        %1530 = vmatpush1.msra.mxu0 0.0
        %1531 = vmatprep.subr.mxu0 0.0
        %1532 = vmatpush1.msra.mxu0 0.0
        %1533 = vmatprep.subr.mxu0 0.0
        %1534 = vmatpush1.msra.mxu0 0.0
        %1535 = vmatprep.mubr.f32.mxu0 0.0
        %1536 = vmatmul.mubr.f32.gmra.mrb[0].mxu0 %v1469
        %v1537 = vpop.f32.mrb[0].mxu0
        %v1538 = vadd.f32 %v1466, %v1537
        %v1539 = vpop.f32.mrb[0].mxu0
        %1540 = vdwg.mxu0
        %v1541 = vmax.f32 %v1538, 0.0
        %v1542 = vld [vmem:[%s6] sm:$0xff]
        %v1543 = vld [vmem:[%s6 + $0x8] sm:$0xff]
        %v1544 = vld [vmem:[%s6 + $0x10] sm:$0xff]
        %v1545 = vld [vmem:[%s6 + $0x18] sm:$0xff]
        %v1546 = vld [vmem:[%s6 + $0x20] sm:$0xff]
        %v1547 = vld [vmem:[%s6 + $0x28] sm:$0xff]
        %v1548 = vld [vmem:[%s6 + $0x30] sm:$0xff]
        %v1549 = vld [vmem:[%s6 + $0x38] sm:$0xff]
        %v1550 = vld [vmem:[%s6 + $0x40] sm:$0xff]
        %v1551 = vld [vmem:[%s6 + $0x48] sm:$0xff]
        %v1552 = vld [vmem:[%s6 + $0x50] sm:$0xff]
        %v1553 = vld [vmem:[%s6 + $0x58] sm:$0xff]
        %v1554 = vld [vmem:[%s6 + $0x60] sm:$0xff]
        %v1555 = vld [vmem:[%s6 + $0x68] sm:$0xff]
        %v1556 = vld [vmem:[%s6 + $0x70] sm:$0xff]
        %v1557 = vld [vmem:[%s6 + $0x78] sm:$0xff]
        %1558 = vmatprep.subr.mxu0 0.0
        %1559 = vmatpush1.msra.mxu0 %v1542
        %1560 = vmatprep.subr.mxu0 0.0
        %1561 = vmatpush1.msra.mxu0 %v1543
        %1562 = vmatprep.subr.mxu0 0.0
        %1563 = vmatpush1.msra.mxu0 %v1544
        %1564 = vmatprep.subr.mxu0 0.0
        %1565 = vmatpush1.msra.mxu0 %v1545
        %1566 = vmatprep.subr.mxu0 0.0
        %1567 = vmatpush1.msra.mxu0 %v1546
        %1568 = vmatprep.subr.mxu0 0.0
        %1569 = vmatpush1.msra.mxu0 %v1547
        %1570 = vmatprep.subr.mxu0 0.0
        %1571 = vmatpush1.msra.mxu0 %v1548
        %1572 = vmatprep.subr.mxu0 0.0
        %1573 = vmatpush1.msra.mxu0 %v1549
        %1574 = vmatprep.subr.mxu0 0.0
        %1575 = vmatpush1.msra.mxu0 %v1550
        %1576 = vmatprep.subr.mxu0 0.0
        %1577 = vmatpush1.msra.mxu0 %v1551
        %1578 = vmatprep.subr.mxu0 0.0
        %1579 = vmatpush1.msra.mxu0 %v1552
        %1580 = vmatprep.subr.mxu0 0.0
        %1581 = vmatpush1.msra.mxu0 %v1553
        %1582 = vmatprep.subr.mxu0 0.0
        %1583 = vmatpush1.msra.mxu0 %v1554
        %1584 = vmatprep.subr.mxu0 0.0
        %1585 = vmatpush1.msra.mxu0 %v1555
        %1586 = vmatprep.subr.mxu0 0.0
        %1587 = vmatpush1.msra.mxu0 %v1556
        %1588 = vmatprep.subr.mxu0 0.0
        %1589 = vmatpush1.msra.mxu0 %v1557
        %1590 = vmatprep.subr.mxu0 0.0
        %1591 = vmatpush1.msra.mxu0 0.0
        %1592 = vmatprep.subr.mxu0 0.0
        %1593 = vmatpush1.msra.mxu0 0.0
        %1594 = vmatprep.subr.mxu0 0.0
        %1595 = vmatpush1.msra.mxu0 0.0
        %1596 = vmatprep.subr.mxu0 0.0
        %1597 = vmatpush1.msra.mxu0 0.0
        %1598 = vmatprep.subr.mxu0 0.0
        %1599 = vmatpush1.msra.mxu0 0.0
        %1600 = vmatprep.subr.mxu0 0.0
        %1601 = vmatpush1.msra.mxu0 0.0
        %1602 = vmatprep.subr.mxu0 0.0
        %1603 = vmatpush1.msra.mxu0 0.0
        %1604 = vmatprep.subr.mxu0 0.0
        %1605 = vmatpush1.msra.mxu0 0.0
        %1606 = vmatprep.subr.mxu0 0.0
        %1607 = vmatpush1.msra.mxu0 0.0
        %1608 = vmatprep.subr.mxu0 0.0
        %1609 = vmatpush1.msra.mxu0 0.0
        %1610 = vmatprep.subr.mxu0 0.0
        %1611 = vmatpush1.msra.mxu0 0.0
        %1612 = vmatprep.subr.mxu0 0.0
        %1613 = vmatpush1.msra.mxu0 0.0
        %1614 = vmatprep.subr.mxu0 0.0
        %1615 = vmatpush1.msra.mxu0 0.0
        %1616 = vmatprep.subr.mxu0 0.0
        %1617 = vmatpush1.msra.mxu0 0.0
        %1618 = vmatprep.subr.mxu0 0.0
        %1619 = vmatpush1.msra.mxu0 0.0
        %1620 = vmatprep.subr.mxu0 0.0
        %1621 = vmatpush1.msra.mxu0 0.0
        %1622 = vmatprep.mubr.f32.mxu0 0.0
        %1623 = vmatmul.mubr.f32.gmra.mrb[0].mxu0 %v1541
        %v1624 = vpop.f32.mrb[0].mxu0
        %v1625 = vadd.f32 %v1456, %v1624
        %v1626 = vpop.f32.mrb[0].mxu0
        %1627 = vdwg.mxu0
        %v1628 = vlaneseq
        %v1629 = vshrl.u32 %v1628, 7
        %v1630 = vsub.s32 2, %v1629
        %v1631 = vrot.slane %v320, %v1630
        %v1632 = vmul.f32 %v1625, %v1631
        %v1633 = vlaneseq
        %v1634 = vshrl.u32 %v1633, 7
        %v1635 = vsub.s32 3, %v1634
        %v1636 = vrot.slane %v320, %v1635
        %v1637 = vadd.f32 %v1632, %v1636
        %1638 = vst.msk [vmem:[%s309] sm:$0xff] %vm333, %v1637
        %s1639 = sand.u32 %s208, 1
        %s1640 = scalar_lea.sflag [#allocation3], %s1639
        %s1641 = sand.u32 %s208, 1
        %s1642 = smul.addr %s1641, 8
        %s1643 = scalar_lea.vmem [#allocation2], %s1642
        // Predicated region
        $region53: #{tpu_custom_call.1} parent=51 // pred_check
          %p1644 = pneg %p218
        $region54: #{tpu_custom_call.1} parent=51 // pred_check_branch
          %1646 = sbr.rel (%p1644) target = $region56
        $region55: #{tpu_custom_call.1} parent=51 // pred_region
          %s1648 = ssub.s32 128, 128
          %1649 = vsyncadd %s1640, %s1648
          %s1650 = smul.addr %s22, 128
          %s1651 = scalar_lea.hbm %s8, %s1650
          %s1653 = sshll.u32 %s1643, 4
          %s1654 = int_to_ptr.vmem [resolvable:$true] %s1653
          %1656 = dma.vmem_to_hbm [thread:$0]  %s1654, 128, %s1651, %s1640
        $region56: #{tpu_custom_call.1} parent=51 // pred_fallthru
          _
      $region52: #{tpu_custom_call.1} parent=5 // pred_fallthru
        _
      %p1657 = scmp.le.s32.totalorder 2, %s17
      // Predicated region
      $region57: #{tpu_custom_call.1} parent=5 // pred_check
        %p1658 = pneg %p1657
      $region58: #{tpu_custom_call.1} parent=5 // pred_check_branch
        %1660 = sbr.rel (%p1658) target = $region60
      $region59: #{tpu_custom_call.1} parent=5 // pred_region
        %s1661 = ssub.s32 %s17, 2
        // Predicated region
        $region61: #{tpu_custom_call.1} parent=59 // pred_check
          %p1662 = pneg %p224
        $region62: #{tpu_custom_call.1} parent=59 // pred_check_branch
          %1664 = sbr.rel (%p1662) target = $region64
        $region63: #{tpu_custom_call.1} parent=59 // pred_region
          %s1665 = sand.u32 %s209, 1
          %s1666 = scalar_lea.sflag [#allocation3], %s1665
          %s1667 = sand.u32 %s209, 1
          %s1668 = smul.addr %s1667, 8
          %s1669 = scalar_lea.vmem [#allocation2], %s1668
          %1670 = dma.done %s1666, 128
        $region64: #{tpu_custom_call.1} parent=59 // pred_fallthru
          _
      $region60: #{tpu_custom_call.1} parent=5 // pred_fallthru
        _
    $region6: #{tpu_custom_call.1} parent=1 // loop_footer
      %s21 = sadd.s32 1, %s17
    $region7: #{tpu_custom_call.1} parent=1 // loop_footer_branch
      %16 = sbr.rel target = $region3
    $region8: #{tpu_custom_call.1} parent=1 // loop_exit
      _
    %1671 = vsyncpa [#allocation3], 1
    %s1672 = scalar_lea.sflag [#allocation3], 1
    %1673 = vsyncpa %s1672, 1

</llo_original>
